<compile_context>
chip_gen: v6e
topology: v6e:2x2x1
jax: 0.10.0
libtpu: 0.0.40
codegen_flags: <defaults>
</compile_context>

<pallas_src>
import functools

import jax
import jax.numpy as jnp
from jax import lax
from jax.experimental import pallas as pl
from jax.experimental.pallas import tpu as pltpu

EPS = 1e-5


def tcn_kernel(x_ref,
               b1c1_w, b1g1, b1be1, b1c2_w, b1g2, b1be2, b1d_w, b1d_b,
               b2c1_w, b2g1, b2be1, b2c2_w, b2g2, b2be2, fin_w, fin_b,
               o_ref, *, seg_len):
    x = x_ref[...].astype(jnp.float32)          # (Cin, N), N = B*seg_len on lanes
    n = x.shape[1]
    inv_n = 1.0 / float(n)
    # Position of every lane inside its length-L segment (batch-major flatten).
    l_idx = lax.broadcasted_iota(jnp.int32, (1, n), 1) % seg_len

    def dconv(h, w_ref, d):
        """K=3 'same' dilated conv as 3 accumulating MXU matmuls on (Ci, B*L).

        w_ref: (3, Co, Ci) per-tap weights (static first-axis reads).
        Off-centre taps via pltpu.roll (XLU) + per-segment edge mask -> no padded
        scratch and no 3x im2col slab.
        """
        out = jnp.dot(w_ref[1], h, preferred_element_type=jnp.float32)   # x[l]
        left = jnp.where(l_idx >= d, pltpu.roll(h, d, axis=1), 0.0)      # x[l-d]
        out += jnp.dot(w_ref[0], left, preferred_element_type=jnp.float32)
        right = jnp.where(l_idx < seg_len - d,
                          pltpu.roll(h, n - d, axis=1), 0.0)             # x[l+d]
        out += jnp.dot(w_ref[2], right, preferred_element_type=jnp.float32)
        return out

    def pconv(h, w_ref, b_ref):
        """1x1 Conv1d with bias: (Co,Ci) @ (Ci,N) + (Co,1)."""
        return jnp.dot(w_ref[...], h, preferred_element_type=jnp.float32) + b_ref[...]

    def bn(h, g_ref, be_ref):
        """Training-mode BatchNorm1d fused to a single scale/shift pass.

        One-pass sum / sum-sq kept in f32 (fine at this scale); switch to a
        shifted two-pass form if matmul operands are ever moved to bf16.
        """
        mean = jnp.sum(h, axis=1, keepdims=True) * inv_n            # (C,1)
        ss = jnp.sum(h * h, axis=1, keepdims=True) * inv_n          # (C,1)
        var = ss - mean * mean                                      # biased var
        scale = g_ref[...] * lax.rsqrt(var + EPS)
        shift = be_ref[...] - mean * scale
        return h * scale + shift

    # --- TCN block 1: dilation=1, 1x1 downsample residual (Cin -> hidden) ---
    res = pconv(x, b1d_w, b1d_b)
    h = jnp.maximum(bn(dconv(x, b1c1_w, 1), b1g1, b1be1), 0.0)
    h = jnp.maximum(bn(dconv(h, b1c2_w, 1), b1g2, b1be2) + res, 0.0)

    # --- TCN block 2: dilation=2, identity residual (hidden -> hidden) ---
    res = h
    g = jnp.maximum(bn(dconv(h, b2c1_w, 2), b2g1, b2be1), 0.0)
    h = jnp.maximum(bn(dconv(g, b2c2_w, 2), b2g2, b2be2) + res, 0.0)

    # --- final 1x1 conv back to input_channels: lane-dense (Cin, B*L) store ---
    o_ref[...] = pconv(h, fin_w, fin_b).astype(o_ref.dtype)


def tcn_forward(x_ncl, params):
    """x: (B, C_in, L) f32 -> (B, C_in, L) f32.

    One wrapper-side layout transform on each side of the kernel; inside, all
    activations live as (C, B*L) so the lane axis is dense (128 when B*L=128).
    """
    B, Cin, L = x_ncl.shape
    n = B * L
    x_cn = jnp.transpose(x_ncl, (1, 0, 2)).reshape(Cin, n)
    vmem = pl.BlockSpec(memory_space=pltpu.MemorySpace.VMEM)
    out_cn = pl.pallas_call(
        functools.partial(tcn_kernel, seg_len=L),
        out_shape=jax.ShapeDtypeStruct((Cin, n), jnp.float32),
        in_specs=[vmem] * (1 + len(params)),
        out_specs=vmem,
    )(x_cn, *params)
    return jnp.transpose(out_cn.reshape(Cin, B, L), (1, 0, 2))


def make_params(key, input_channels=8, hidden_channels=16, kernel_size=3):
    """Deterministic synthetic parameters.

    Dilated-conv weights are stored per-tap as (K, Co, Ci) (from PyTorch's
    (Co, Ci, K)); 1x1 conv weights as (Co, Ci).  Biases of convs feeding
    training-mode BatchNorm are omitted (exactly cancelled by mean subtraction).
    """
    keys = iter(jax.random.split(key, 16))
    ic, hc, K = input_channels, hidden_channels, kernel_size

    def dconv_w(o, i):
        w = jax.random.normal(next(keys), (o, i, K), jnp.float32) * 0.1  # (O,I,K)
        return jnp.transpose(w, (2, 0, 1))                               # -> (K,O,I)

    def pconv_w(o, i):
        return jax.random.normal(next(keys), (o, i), jnp.float32) * 0.1

    def conv_b(o):
        return jax.random.normal(next(keys), (o, 1), jnp.float32) * 0.1

    def bn_gamma(c):
        return 1.0 + 0.1 * jax.random.normal(next(keys), (c, 1), jnp.float32)

    def bn_beta(c):
        return 0.1 * jax.random.normal(next(keys), (c, 1), jnp.float32)

    b1c1_w = dconv_w(hc, ic); b1g1, b1be1 = bn_gamma(hc), bn_beta(hc)
    b1c2_w = dconv_w(hc, hc); b1g2, b1be2 = bn_gamma(hc), bn_beta(hc)
    b1d_w, b1d_b = pconv_w(hc, ic), conv_b(hc)     # downsample (in_ch != out_ch)
    b2c1_w = dconv_w(hc, hc); b2g1, b2be1 = bn_gamma(hc), bn_beta(hc)
    b2c2_w = dconv_w(hc, hc); b2g2, b2be2 = bn_gamma(hc), bn_beta(hc)
    fin_w, fin_b = pconv_w(ic, hc), conv_b(ic)     # final 1x1 conv

    return [b1c1_w, b1g1, b1be1, b1c2_w, b1g2, b1be2, b1d_w, b1d_b,
            b2c1_w, b2g1, b2be1, b2c2_w, b2g2, b2be2, fin_w, fin_b]


def tcn_reference(x, params):
    """Pure-jnp reference (same training-mode BN semantics) for correctness."""
    (b1c1_w, b1g1, b1be1, b1c2_w, b1g2, b1be2, b1d_w, b1d_b,
     b2c1_w, b2g1, b2be1, b2c2_w, b2g2, b2be2, fin_w, fin_b) = params

    def dconv(x, w, dilation):
        K = w.shape[0]
        B, Ci, L = x.shape
        pad = (K - 1) * dilation // 2
        xp = jnp.pad(x, ((0, 0), (0, 0), (pad, pad)))
        xs = jnp.stack([xp[:, :, k * dilation:k * dilation + L] for k in range(K)],
                       axis=0)                                  # (K, B, Ci, L)
        return jnp.einsum('koc,kbcl->bol', w, xs)

    def pconv(x, w, b):
        return jnp.einsum('oc,bcl->bol', w, x) + b[None, :, :]

    def bn(x, g, be):
        mean = jnp.mean(x, axis=(0, 2), keepdims=True)
        var = jnp.mean((x - mean) ** 2, axis=(0, 2), keepdims=True)
        return (x - mean) * lax.rsqrt(var + EPS) * g[None] + be[None]

    res = pconv(x, b1d_w, b1d_b)
    h = jnp.maximum(bn(dconv(x, b1c1_w, 1), b1g1, b1be1), 0.0)
    h = jnp.maximum(bn(dconv(h, b1c2_w, 1), b1g2, b1be2) + res, 0.0)
    res = h
    g = jnp.maximum(bn(dconv(h, b2c1_w, 2), b2g1, b2be1), 0.0)
    h = jnp.maximum(bn(dconv(g, b2c2_w, 2), b2g2, b2be2) + res, 0.0)
    return pconv(h, fin_w, fin_b)


if __name__ == "__main__":
    key = jax.random.PRNGKey(0)
    kx, kp = jax.random.split(key)
    # TCNModel(input_channels=8, hidden_channels=16); B*L = 128 -> internal
    # (C, B*L) layout is exactly one dense 128-lane group.
    B, C, L = 2, 8, 64
    x = jax.random.normal(kx, (B, C, L), jnp.float32)
    params = make_params(kp, input_channels=C, hidden_channels=16, kernel_size=3)

    out = tcn_forward(x, params)
    jax.block_until_ready(out)
    assert out.shape == (B, C, L) and out.dtype == jnp.float32

    ref = tcn_reference(x, params)
    err = float(jnp.max(jnp.abs(out - ref)))
    assert err < 1e-3, f"max abs error vs reference: {err}"
    print("KERNEL_OK")
</pallas_src>

<mosaic_0001>
module attributes {stable_mosaic.version = 11 : i64} {
  func.func @tcn_kernel(%arg0: memref<8x128xf32, #tpu.memory_space<vmem>>, %arg1: memref<3x16x8xf32, #tpu.memory_space<vmem>>, %arg2: memref<16x1xf32, #tpu.memory_space<vmem>>, %arg3: memref<16x1xf32, #tpu.memory_space<vmem>>, %arg4: memref<3x16x16xf32, #tpu.memory_space<vmem>>, %arg5: memref<16x1xf32, #tpu.memory_space<vmem>>, %arg6: memref<16x1xf32, #tpu.memory_space<vmem>>, %arg7: memref<16x8xf32, #tpu.memory_space<vmem>>, %arg8: memref<16x1xf32, #tpu.memory_space<vmem>>, %arg9: memref<3x16x16xf32, #tpu.memory_space<vmem>>, %arg10: memref<16x1xf32, #tpu.memory_space<vmem>>, %arg11: memref<16x1xf32, #tpu.memory_space<vmem>>, %arg12: memref<3x16x16xf32, #tpu.memory_space<vmem>>, %arg13: memref<16x1xf32, #tpu.memory_space<vmem>>, %arg14: memref<16x1xf32, #tpu.memory_space<vmem>>, %arg15: memref<8x16xf32, #tpu.memory_space<vmem>>, %arg16: memref<8x1xf32, #tpu.memory_space<vmem>>, %arg17: memref<8x128xf32, #tpu.memory_space<vmem>>) attributes {dimension_semantics = [], scalar_prefetch = 0 : i64, scratch_operands = 0 : i64, tpu.core_type = #tpu.core_type<tc>} {
    %c0 = arith.constant 0 : index
    %c0_0 = arith.constant 0 : index
    %0 = vector.load %arg0[%c0, %c0_0] : memref<8x128xf32, #tpu.memory_space<vmem>>, vector<8x128xf32>
    %1 = tpu.iota {dimensions = array<i32: 1>} : vector<1x128xi32>
    %c64_i32 = arith.constant 64 : i32
    %c0_i32 = arith.constant 0 : i32
    %2 = arith.cmpi eq, %c64_i32, %c0_i32 : i32
    %c1_i32 = arith.constant 1 : i32
    %3 = arith.select %2, %c1_i32, %c64_i32 : i32
    %4 = vector.broadcast %3 : i32 to vector<1x128xi32>
    %5 = arith.remsi %1, %4 : vector<1x128xi32>
    %c0_i32_1 = arith.constant 0 : i32
    %6 = vector.broadcast %c0_i32_1 : i32 to vector<1x128xi32>
    %7 = arith.cmpi ne, %5, %6 : vector<1x128xi32>
    %c0_i32_2 = arith.constant 0 : i32
    %8 = vector.broadcast %c0_i32_2 : i32 to vector<1x128xi32>
    %9 = arith.cmpi slt, %5, %8 : vector<1x128xi32>
    %c0_i32_3 = arith.constant 0 : i32
    %10 = arith.cmpi slt, %3, %c0_i32_3 : i32
    %11 = vector.broadcast %10 : i1 to vector<1x128xi1>
    %12 = vector.broadcast %11 : vector<1x128xi1> to vector<1x128xi1>
    %13 = arith.xori %9, %12 : vector<1x128xi1>
    %14 = arith.andi %13, %7 : vector<1x128xi1>
    %15 = vector.broadcast %3 : i32 to vector<1x128xi32>
    %16 = arith.addi %5, %15 : vector<1x128xi32>
    %17 = arith.select %14, %16, %5 : vector<1x128xi1>, vector<1x128xi32>
    %c0_4 = arith.constant 0 : index
    %c0_5 = arith.constant 0 : index
    %18 = vector.load %arg7[%c0_4, %c0_5] : memref<16x8xf32, #tpu.memory_space<vmem>>, vector<16x8xf32>
    %cst = arith.constant dense<0.000000e+00> : vector<16x128xf32>
    %19 = tpu.matmul %18, %0, %cst {dimension_numbers = #tpu.dot_dimension_numbers<[1], [0], [0], [1], [0, 0, 1, 1], [], []>} : vector<16x8xf32>, vector<8x128xf32>, vector<16x128xf32> -> vector<16x128xf32>
    %c0_6 = arith.constant 0 : index
    %c0_7 = arith.constant 0 : index
    %20 = vector.load %arg8[%c0_6, %c0_7] : memref<16x1xf32, #tpu.memory_space<vmem>>, vector<16x1xf32>
    %21 = vector.broadcast %20 : vector<16x1xf32> to vector<16x128xf32>
    %22 = arith.addf %19, %21 : vector<16x128xf32>
    %c1 = arith.constant 1 : index
    %c0_8 = arith.constant 0 : index
    %c0_9 = arith.constant 0 : index
    %23 = vector.load %arg1[%c1, %c0_8, %c0_9] : memref<3x16x8xf32, #tpu.memory_space<vmem>>, vector<1x16x8xf32>
    %24 = vector.shape_cast %23 : vector<1x16x8xf32> to vector<16x8xf32>
    %cst_10 = arith.constant dense<0.000000e+00> : vector<16x128xf32>
    %25 = tpu.matmul %24, %0, %cst_10 {dimension_numbers = #tpu.dot_dimension_numbers<[1], [0], [0], [1], [0, 0, 1, 1], [], []>} : vector<16x8xf32>, vector<8x128xf32>, vector<16x128xf32> -> vector<16x128xf32>
    %c1_i32_11 = arith.constant 1 : i32
    %26 = vector.broadcast %c1_i32_11 : i32 to vector<1x128xi32>
    %27 = arith.cmpi sge, %17, %26 : vector<1x128xi32>
    %c1_i32_12 = arith.constant 1 : i32
    %28 = tpu.dynamic_rotate %0 by %c1_i32_12 dim 1 : vector<8x128xf32>, i32 -> vector<8x128xf32>
    %cst_13 = arith.constant 0.000000e+00 : f32
    %29 = vector.shape_cast %27 : vector<1x128xi1> to vector<1x128xi1>
    %30 = vector.broadcast %29 : vector<1x128xi1> to vector<8x128xi1>
    %31 = vector.broadcast %cst_13 : f32 to vector<8x128xf32>
    %32 = arith.select %30, %28, %31 : vector<8x128xi1>, vector<8x128xf32>
    %c0_14 = arith.constant 0 : index
    %c0_15 = arith.constant 0 : index
    %c0_16 = arith.constant 0 : index
    %33 = vector.load %arg1[%c0_14, %c0_15, %c0_16] : memref<3x16x8xf32, #tpu.memory_space<vmem>>, vector<1x16x8xf32>
    %34 = vector.shape_cast %33 : vector<1x16x8xf32> to vector<16x8xf32>
    %cst_17 = arith.constant dense<0.000000e+00> : vector<16x128xf32>
    %35 = tpu.matmul %34, %32, %cst_17 {dimension_numbers = #tpu.dot_dimension_numbers<[1], [0], [0], [1], [0, 0, 1, 1], [], []>} : vector<16x8xf32>, vector<8x128xf32>, vector<16x128xf32> -> vector<16x128xf32>
    %36 = arith.addf %25, %35 : vector<16x128xf32>
    %c63_i32 = arith.constant 63 : i32
    %37 = vector.broadcast %c63_i32 : i32 to vector<1x128xi32>
    %38 = arith.cmpi slt, %17, %37 : vector<1x128xi32>
    %c127_i32 = arith.constant 127 : i32
    %39 = tpu.dynamic_rotate %0 by %c127_i32 dim 1 : vector<8x128xf32>, i32 -> vector<8x128xf32>
    %cst_18 = arith.constant 0.000000e+00 : f32
    %40 = vector.shape_cast %38 : vector<1x128xi1> to vector<1x128xi1>
    %41 = vector.broadcast %40 : vector<1x128xi1> to vector<8x128xi1>
    %42 = vector.broadcast %cst_18 : f32 to vector<8x128xf32>
    %43 = arith.select %41, %39, %42 : vector<8x128xi1>, vector<8x128xf32>
    %c2 = arith.constant 2 : index
    %c0_19 = arith.constant 0 : index
    %c0_20 = arith.constant 0 : index
    %44 = vector.load %arg1[%c2, %c0_19, %c0_20] : memref<3x16x8xf32, #tpu.memory_space<vmem>>, vector<1x16x8xf32>
    %45 = vector.shape_cast %44 : vector<1x16x8xf32> to vector<16x8xf32>
    %cst_21 = arith.constant dense<0.000000e+00> : vector<16x128xf32>
    %46 = tpu.matmul %45, %43, %cst_21 {dimension_numbers = #tpu.dot_dimension_numbers<[1], [0], [0], [1], [0, 0, 1, 1], [], []>} : vector<16x8xf32>, vector<8x128xf32>, vector<16x128xf32> -> vector<16x128xf32>
    %47 = arith.addf %36, %46 : vector<16x128xf32>
    %cst_22 = arith.constant dense<0.000000e+00> : vector<16xf32>
    %48 = vector.multi_reduction <add>, %47, %cst_22 [1] : vector<16x128xf32> to vector<16xf32>
    %49 = vector.shape_cast %48 : vector<16xf32> to vector<16x1xf32>
    %cst_23 = arith.constant 7.812500e-03 : f32
    %50 = vector.broadcast %cst_23 : f32 to vector<16x1xf32>
    %51 = arith.mulf %49, %50 : vector<16x1xf32>
    %52 = arith.mulf %47, %47 : vector<16x128xf32>
    %cst_24 = arith.constant dense<0.000000e+00> : vector<16xf32>
    %53 = vector.multi_reduction <add>, %52, %cst_24 [1] : vector<16x128xf32> to vector<16xf32>
    %54 = vector.shape_cast %53 : vector<16xf32> to vector<16x1xf32>
    %cst_25 = arith.constant 7.812500e-03 : f32
    %55 = vector.broadcast %cst_25 : f32 to vector<16x1xf32>
    %56 = arith.mulf %54, %55 : vector<16x1xf32>
    %57 = arith.mulf %51, %51 : vector<16x1xf32>
    %58 = arith.subf %56, %57 : vector<16x1xf32>
    %c0_26 = arith.constant 0 : index
    %c0_27 = arith.constant 0 : index
    %59 = vector.load %arg2[%c0_26, %c0_27] : memref<16x1xf32, #tpu.memory_space<vmem>>, vector<16x1xf32>
    %cst_28 = arith.constant 9.99999974E-6 : f32
    %60 = vector.broadcast %cst_28 : f32 to vector<16x1xf32>
    %61 = arith.addf %58, %60 : vector<16x1xf32>
    %62 = math.rsqrt %61 : vector<16x1xf32>
    %63 = arith.mulf %59, %62 : vector<16x1xf32>
    %c0_29 = arith.constant 0 : index
    %c0_30 = arith.constant 0 : index
    %64 = vector.load %arg3[%c0_29, %c0_30] : memref<16x1xf32, #tpu.memory_space<vmem>>, vector<16x1xf32>
    %65 = arith.mulf %51, %63 : vector<16x1xf32>
    %66 = arith.subf %64, %65 : vector<16x1xf32>
    %67 = vector.broadcast %63 : vector<16x1xf32> to vector<16x128xf32>
    %68 = arith.mulf %47, %67 : vector<16x128xf32>
    %69 = vector.broadcast %66 : vector<16x1xf32> to vector<16x128xf32>
    %70 = arith.addf %68, %69 : vector<16x128xf32>
    %cst_31 = arith.constant 0.000000e+00 : f32
    %71 = vector.broadcast %cst_31 : f32 to vector<16x128xf32>
    %72 = arith.maximumf %70, %71 : vector<16x128xf32>
    %c1_32 = arith.constant 1 : index
    %c0_33 = arith.constant 0 : index
    %c0_34 = arith.constant 0 : index
    %73 = vector.load %arg4[%c1_32, %c0_33, %c0_34] : memref<3x16x16xf32, #tpu.memory_space<vmem>>, vector<1x16x16xf32>
    %74 = vector.shape_cast %73 : vector<1x16x16xf32> to vector<16x16xf32>
    %cst_35 = arith.constant dense<0.000000e+00> : vector<16x128xf32>
    %75 = tpu.matmul %74, %72, %cst_35 {dimension_numbers = #tpu.dot_dimension_numbers<[1], [0], [0], [1], [0, 0, 1, 1], [], []>} : vector<16x16xf32>, vector<16x128xf32>, vector<16x128xf32> -> vector<16x128xf32>
    %c1_i32_36 = arith.constant 1 : i32
    %76 = vector.broadcast %c1_i32_36 : i32 to vector<1x128xi32>
    %77 = arith.cmpi sge, %17, %76 : vector<1x128xi32>
    %c1_i32_37 = arith.constant 1 : i32
    %78 = tpu.dynamic_rotate %72 by %c1_i32_37 dim 1 : vector<16x128xf32>, i32 -> vector<16x128xf32>
    %cst_38 = arith.constant 0.000000e+00 : f32
    %79 = vector.shape_cast %77 : vector<1x128xi1> to vector<1x128xi1>
    %80 = vector.broadcast %79 : vector<1x128xi1> to vector<16x128xi1>
    %81 = vector.broadcast %cst_38 : f32 to vector<16x128xf32>
    %82 = arith.select %80, %78, %81 : vector<16x128xi1>, vector<16x128xf32>
    %c0_39 = arith.constant 0 : index
    %c0_40 = arith.constant 0 : index
    %c0_41 = arith.constant 0 : index
    %83 = vector.load %arg4[%c0_39, %c0_40, %c0_41] : memref<3x16x16xf32, #tpu.memory_space<vmem>>, vector<1x16x16xf32>
    %84 = vector.shape_cast %83 : vector<1x16x16xf32> to vector<16x16xf32>
    %cst_42 = arith.constant dense<0.000000e+00> : vector<16x128xf32>
    %85 = tpu.matmul %84, %82, %cst_42 {dimension_numbers = #tpu.dot_dimension_numbers<[1], [0], [0], [1], [0, 0, 1, 1], [], []>} : vector<16x16xf32>, vector<16x128xf32>, vector<16x128xf32> -> vector<16x128xf32>
    %86 = arith.addf %75, %85 : vector<16x128xf32>
    %c63_i32_43 = arith.constant 63 : i32
    %87 = vector.broadcast %c63_i32_43 : i32 to vector<1x128xi32>
    %88 = arith.cmpi slt, %17, %87 : vector<1x128xi32>
    %c127_i32_44 = arith.constant 127 : i32
    %89 = tpu.dynamic_rotate %72 by %c127_i32_44 dim 1 : vector<16x128xf32>, i32 -> vector<16x128xf32>
    %cst_45 = arith.constant 0.000000e+00 : f32
    %90 = vector.shape_cast %88 : vector<1x128xi1> to vector<1x128xi1>
    %91 = vector.broadcast %90 : vector<1x128xi1> to vector<16x128xi1>
    %92 = vector.broadcast %cst_45 : f32 to vector<16x128xf32>
    %93 = arith.select %91, %89, %92 : vector<16x128xi1>, vector<16x128xf32>
    %c2_46 = arith.constant 2 : index
    %c0_47 = arith.constant 0 : index
    %c0_48 = arith.constant 0 : index
    %94 = vector.load %arg4[%c2_46, %c0_47, %c0_48] : memref<3x16x16xf32, #tpu.memory_space<vmem>>, vector<1x16x16xf32>
    %95 = vector.shape_cast %94 : vector<1x16x16xf32> to vector<16x16xf32>
    %cst_49 = arith.constant dense<0.000000e+00> : vector<16x128xf32>
    %96 = tpu.matmul %95, %93, %cst_49 {dimension_numbers = #tpu.dot_dimension_numbers<[1], [0], [0], [1], [0, 0, 1, 1], [], []>} : vector<16x16xf32>, vector<16x128xf32>, vector<16x128xf32> -> vector<16x128xf32>
    %97 = arith.addf %86, %96 : vector<16x128xf32>
    %cst_50 = arith.constant dense<0.000000e+00> : vector<16xf32>
    %98 = vector.multi_reduction <add>, %97, %cst_50 [1] : vector<16x128xf32> to vector<16xf32>
    %99 = vector.shape_cast %98 : vector<16xf32> to vector<16x1xf32>
    %cst_51 = arith.constant 7.812500e-03 : f32
    %100 = vector.broadcast %cst_51 : f32 to vector<16x1xf32>
    %101 = arith.mulf %99, %100 : vector<16x1xf32>
    %102 = arith.mulf %97, %97 : vector<16x128xf32>
    %cst_52 = arith.constant dense<0.000000e+00> : vector<16xf32>
    %103 = vector.multi_reduction <add>, %102, %cst_52 [1] : vector<16x128xf32> to vector<16xf32>
    %104 = vector.shape_cast %103 : vector<16xf32> to vector<16x1xf32>
    %cst_53 = arith.constant 7.812500e-03 : f32
    %105 = vector.broadcast %cst_53 : f32 to vector<16x1xf32>
    %106 = arith.mulf %104, %105 : vector<16x1xf32>
    %107 = arith.mulf %101, %101 : vector<16x1xf32>
    %108 = arith.subf %106, %107 : vector<16x1xf32>
    %c0_54 = arith.constant 0 : index
    %c0_55 = arith.constant 0 : index
    %109 = vector.load %arg5[%c0_54, %c0_55] : memref<16x1xf32, #tpu.memory_space<vmem>>, vector<16x1xf32>
    %cst_56 = arith.constant 9.99999974E-6 : f32
    %110 = vector.broadcast %cst_56 : f32 to vector<16x1xf32>
    %111 = arith.addf %108, %110 : vector<16x1xf32>
    %112 = math.rsqrt %111 : vector<16x1xf32>
    %113 = arith.mulf %109, %112 : vector<16x1xf32>
    %c0_57 = arith.constant 0 : index
    %c0_58 = arith.constant 0 : index
    %114 = vector.load %arg6[%c0_57, %c0_58] : memref<16x1xf32, #tpu.memory_space<vmem>>, vector<16x1xf32>
    %115 = arith.mulf %101, %113 : vector<16x1xf32>
    %116 = arith.subf %114, %115 : vector<16x1xf32>
    %117 = vector.broadcast %113 : vector<16x1xf32> to vector<16x128xf32>
    %118 = arith.mulf %97, %117 : vector<16x128xf32>
    %119 = vector.broadcast %116 : vector<16x1xf32> to vector<16x128xf32>
    %120 = arith.addf %118, %119 : vector<16x128xf32>
    %121 = arith.addf %120, %22 : vector<16x128xf32>
    %cst_59 = arith.constant 0.000000e+00 : f32
    %122 = vector.broadcast %cst_59 : f32 to vector<16x128xf32>
    %123 = arith.maximumf %121, %122 : vector<16x128xf32>
    %c1_60 = arith.constant 1 : index
    %c0_61 = arith.constant 0 : index
    %c0_62 = arith.constant 0 : index
    %124 = vector.load %arg9[%c1_60, %c0_61, %c0_62] : memref<3x16x16xf32, #tpu.memory_space<vmem>>, vector<1x16x16xf32>
    %125 = vector.shape_cast %124 : vector<1x16x16xf32> to vector<16x16xf32>
    %cst_63 = arith.constant dense<0.000000e+00> : vector<16x128xf32>
    %126 = tpu.matmul %125, %123, %cst_63 {dimension_numbers = #tpu.dot_dimension_numbers<[1], [0], [0], [1], [0, 0, 1, 1], [], []>} : vector<16x16xf32>, vector<16x128xf32>, vector<16x128xf32> -> vector<16x128xf32>
    %c2_i32 = arith.constant 2 : i32
    %127 = vector.broadcast %c2_i32 : i32 to vector<1x128xi32>
    %128 = arith.cmpi sge, %17, %127 : vector<1x128xi32>
    %c2_i32_64 = arith.constant 2 : i32
    %129 = tpu.dynamic_rotate %123 by %c2_i32_64 dim 1 : vector<16x128xf32>, i32 -> vector<16x128xf32>
    %cst_65 = arith.constant 0.000000e+00 : f32
    %130 = vector.shape_cast %128 : vector<1x128xi1> to vector<1x128xi1>
    %131 = vector.broadcast %130 : vector<1x128xi1> to vector<16x128xi1>
    %132 = vector.broadcast %cst_65 : f32 to vector<16x128xf32>
    %133 = arith.select %131, %129, %132 : vector<16x128xi1>, vector<16x128xf32>
    %c0_66 = arith.constant 0 : index
    %c0_67 = arith.constant 0 : index
    %c0_68 = arith.constant 0 : index
    %134 = vector.load %arg9[%c0_66, %c0_67, %c0_68] : memref<3x16x16xf32, #tpu.memory_space<vmem>>, vector<1x16x16xf32>
    %135 = vector.shape_cast %134 : vector<1x16x16xf32> to vector<16x16xf32>
    %cst_69 = arith.constant dense<0.000000e+00> : vector<16x128xf32>
    %136 = tpu.matmul %135, %133, %cst_69 {dimension_numbers = #tpu.dot_dimension_numbers<[1], [0], [0], [1], [0, 0, 1, 1], [], []>} : vector<16x16xf32>, vector<16x128xf32>, vector<16x128xf32> -> vector<16x128xf32>
    %137 = arith.addf %126, %136 : vector<16x128xf32>
    %c62_i32 = arith.constant 62 : i32
    %138 = vector.broadcast %c62_i32 : i32 to vector<1x128xi32>
    %139 = arith.cmpi slt, %17, %138 : vector<1x128xi32>
    %c126_i32 = arith.constant 126 : i32
    %140 = tpu.dynamic_rotate %123 by %c126_i32 dim 1 : vector<16x128xf32>, i32 -> vector<16x128xf32>
    %cst_70 = arith.constant 0.000000e+00 : f32
    %141 = vector.shape_cast %139 : vector<1x128xi1> to vector<1x128xi1>
    %142 = vector.broadcast %141 : vector<1x128xi1> to vector<16x128xi1>
    %143 = vector.broadcast %cst_70 : f32 to vector<16x128xf32>
    %144 = arith.select %142, %140, %143 : vector<16x128xi1>, vector<16x128xf32>
    %c2_71 = arith.constant 2 : index
    %c0_72 = arith.constant 0 : index
    %c0_73 = arith.constant 0 : index
    %145 = vector.load %arg9[%c2_71, %c0_72, %c0_73] : memref<3x16x16xf32, #tpu.memory_space<vmem>>, vector<1x16x16xf32>
    %146 = vector.shape_cast %145 : vector<1x16x16xf32> to vector<16x16xf32>
    %cst_74 = arith.constant dense<0.000000e+00> : vector<16x128xf32>
    %147 = tpu.matmul %146, %144, %cst_74 {dimension_numbers = #tpu.dot_dimension_numbers<[1], [0], [0], [1], [0, 0, 1, 1], [], []>} : vector<16x16xf32>, vector<16x128xf32>, vector<16x128xf32> -> vector<16x128xf32>
    %148 = arith.addf %137, %147 : vector<16x128xf32>
    %cst_75 = arith.constant dense<0.000000e+00> : vector<16xf32>
    %149 = vector.multi_reduction <add>, %148, %cst_75 [1] : vector<16x128xf32> to vector<16xf32>
    %150 = vector.shape_cast %149 : vector<16xf32> to vector<16x1xf32>
    %cst_76 = arith.constant 7.812500e-03 : f32
    %151 = vector.broadcast %cst_76 : f32 to vector<16x1xf32>
    %152 = arith.mulf %150, %151 : vector<16x1xf32>
    %153 = arith.mulf %148, %148 : vector<16x128xf32>
    %cst_77 = arith.constant dense<0.000000e+00> : vector<16xf32>
    %154 = vector.multi_reduction <add>, %153, %cst_77 [1] : vector<16x128xf32> to vector<16xf32>
    %155 = vector.shape_cast %154 : vector<16xf32> to vector<16x1xf32>
    %cst_78 = arith.constant 7.812500e-03 : f32
    %156 = vector.broadcast %cst_78 : f32 to vector<16x1xf32>
    %157 = arith.mulf %155, %156 : vector<16x1xf32>
    %158 = arith.mulf %152, %152 : vector<16x1xf32>
    %159 = arith.subf %157, %158 : vector<16x1xf32>
    %c0_79 = arith.constant 0 : index
    %c0_80 = arith.constant 0 : index
    %160 = vector.load %arg10[%c0_79, %c0_80] : memref<16x1xf32, #tpu.memory_space<vmem>>, vector<16x1xf32>
    %cst_81 = arith.constant 9.99999974E-6 : f32
    %161 = vector.broadcast %cst_81 : f32 to vector<16x1xf32>
    %162 = arith.addf %159, %161 : vector<16x1xf32>
    %163 = math.rsqrt %162 : vector<16x1xf32>
    %164 = arith.mulf %160, %163 : vector<16x1xf32>
    %c0_82 = arith.constant 0 : index
    %c0_83 = arith.constant 0 : index
    %165 = vector.load %arg11[%c0_82, %c0_83] : memref<16x1xf32, #tpu.memory_space<vmem>>, vector<16x1xf32>
    %166 = arith.mulf %152, %164 : vector<16x1xf32>
    %167 = arith.subf %165, %166 : vector<16x1xf32>
    %168 = vector.broadcast %164 : vector<16x1xf32> to vector<16x128xf32>
    %169 = arith.mulf %148, %168 : vector<16x128xf32>
    %170 = vector.broadcast %167 : vector<16x1xf32> to vector<16x128xf32>
    %171 = arith.addf %169, %170 : vector<16x128xf32>
    %cst_84 = arith.constant 0.000000e+00 : f32
    %172 = vector.broadcast %cst_84 : f32 to vector<16x128xf32>
    %173 = arith.maximumf %171, %172 : vector<16x128xf32>
    %c1_85 = arith.constant 1 : index
    %c0_86 = arith.constant 0 : index
    %c0_87 = arith.constant 0 : index
    %174 = vector.load %arg12[%c1_85, %c0_86, %c0_87] : memref<3x16x16xf32, #tpu.memory_space<vmem>>, vector<1x16x16xf32>
    %175 = vector.shape_cast %174 : vector<1x16x16xf32> to vector<16x16xf32>
    %cst_88 = arith.constant dense<0.000000e+00> : vector<16x128xf32>
    %176 = tpu.matmul %175, %173, %cst_88 {dimension_numbers = #tpu.dot_dimension_numbers<[1], [0], [0], [1], [0, 0, 1, 1], [], []>} : vector<16x16xf32>, vector<16x128xf32>, vector<16x128xf32> -> vector<16x128xf32>
    %c2_i32_89 = arith.constant 2 : i32
    %177 = vector.broadcast %c2_i32_89 : i32 to vector<1x128xi32>
    %178 = arith.cmpi sge, %17, %177 : vector<1x128xi32>
    %c2_i32_90 = arith.constant 2 : i32
    %179 = tpu.dynamic_rotate %173 by %c2_i32_90 dim 1 : vector<16x128xf32>, i32 -> vector<16x128xf32>
    %cst_91 = arith.constant 0.000000e+00 : f32
    %180 = vector.shape_cast %178 : vector<1x128xi1> to vector<1x128xi1>
    %181 = vector.broadcast %180 : vector<1x128xi1> to vector<16x128xi1>
    %182 = vector.broadcast %cst_91 : f32 to vector<16x128xf32>
    %183 = arith.select %181, %179, %182 : vector<16x128xi1>, vector<16x128xf32>
    %c0_92 = arith.constant 0 : index
    %c0_93 = arith.constant 0 : index
    %c0_94 = arith.constant 0 : index
    %184 = vector.load %arg12[%c0_92, %c0_93, %c0_94] : memref<3x16x16xf32, #tpu.memory_space<vmem>>, vector<1x16x16xf32>
    %185 = vector.shape_cast %184 : vector<1x16x16xf32> to vector<16x16xf32>
    %cst_95 = arith.constant dense<0.000000e+00> : vector<16x128xf32>
    %186 = tpu.matmul %185, %183, %cst_95 {dimension_numbers = #tpu.dot_dimension_numbers<[1], [0], [0], [1], [0, 0, 1, 1], [], []>} : vector<16x16xf32>, vector<16x128xf32>, vector<16x128xf32> -> vector<16x128xf32>
    %187 = arith.addf %176, %186 : vector<16x128xf32>
    %c62_i32_96 = arith.constant 62 : i32
    %188 = vector.broadcast %c62_i32_96 : i32 to vector<1x128xi32>
    %189 = arith.cmpi slt, %17, %188 : vector<1x128xi32>
    %c126_i32_97 = arith.constant 126 : i32
    %190 = tpu.dynamic_rotate %173 by %c126_i32_97 dim 1 : vector<16x128xf32>, i32 -> vector<16x128xf32>
    %cst_98 = arith.constant 0.000000e+00 : f32
    %191 = vector.shape_cast %189 : vector<1x128xi1> to vector<1x128xi1>
    %192 = vector.broadcast %191 : vector<1x128xi1> to vector<16x128xi1>
    %193 = vector.broadcast %cst_98 : f32 to vector<16x128xf32>
    %194 = arith.select %192, %190, %193 : vector<16x128xi1>, vector<16x128xf32>
    %c2_99 = arith.constant 2 : index
    %c0_100 = arith.constant 0 : index
    %c0_101 = arith.constant 0 : index
    %195 = vector.load %arg12[%c2_99, %c0_100, %c0_101] : memref<3x16x16xf32, #tpu.memory_space<vmem>>, vector<1x16x16xf32>
    %196 = vector.shape_cast %195 : vector<1x16x16xf32> to vector<16x16xf32>
    %cst_102 = arith.constant dense<0.000000e+00> : vector<16x128xf32>
    %197 = tpu.matmul %196, %194, %cst_102 {dimension_numbers = #tpu.dot_dimension_numbers<[1], [0], [0], [1], [0, 0, 1, 1], [], []>} : vector<16x16xf32>, vector<16x128xf32>, vector<16x128xf32> -> vector<16x128xf32>
    %198 = arith.addf %187, %197 : vector<16x128xf32>
    %cst_103 = arith.constant dense<0.000000e+00> : vector<16xf32>
    %199 = vector.multi_reduction <add>, %198, %cst_103 [1] : vector<16x128xf32> to vector<16xf32>
    %200 = vector.shape_cast %199 : vector<16xf32> to vector<16x1xf32>
    %cst_104 = arith.constant 7.812500e-03 : f32
    %201 = vector.broadcast %cst_104 : f32 to vector<16x1xf32>
    %202 = arith.mulf %200, %201 : vector<16x1xf32>
    %203 = arith.mulf %198, %198 : vector<16x128xf32>
    %cst_105 = arith.constant dense<0.000000e+00> : vector<16xf32>
    %204 = vector.multi_reduction <add>, %203, %cst_105 [1] : vector<16x128xf32> to vector<16xf32>
    %205 = vector.shape_cast %204 : vector<16xf32> to vector<16x1xf32>
    %cst_106 = arith.constant 7.812500e-03 : f32
    %206 = vector.broadcast %cst_106 : f32 to vector<16x1xf32>
    %207 = arith.mulf %205, %206 : vector<16x1xf32>
    %208 = arith.mulf %202, %202 : vector<16x1xf32>
    %209 = arith.subf %207, %208 : vector<16x1xf32>
    %c0_107 = arith.constant 0 : index
    %c0_108 = arith.constant 0 : index
    %210 = vector.load %arg13[%c0_107, %c0_108] : memref<16x1xf32, #tpu.memory_space<vmem>>, vector<16x1xf32>
    %cst_109 = arith.constant 9.99999974E-6 : f32
    %211 = vector.broadcast %cst_109 : f32 to vector<16x1xf32>
    %212 = arith.addf %209, %211 : vector<16x1xf32>
    %213 = math.rsqrt %212 : vector<16x1xf32>
    %214 = arith.mulf %210, %213 : vector<16x1xf32>
    %c0_110 = arith.constant 0 : index
    %c0_111 = arith.constant 0 : index
    %215 = vector.load %arg14[%c0_110, %c0_111] : memref<16x1xf32, #tpu.memory_space<vmem>>, vector<16x1xf32>
    %216 = arith.mulf %202, %214 : vector<16x1xf32>
    %217 = arith.subf %215, %216 : vector<16x1xf32>
    %218 = vector.broadcast %214 : vector<16x1xf32> to vector<16x128xf32>
    %219 = arith.mulf %198, %218 : vector<16x128xf32>
    %220 = vector.broadcast %217 : vector<16x1xf32> to vector<16x128xf32>
    %221 = arith.addf %219, %220 : vector<16x128xf32>
    %222 = arith.addf %221, %123 : vector<16x128xf32>
    %cst_112 = arith.constant 0.000000e+00 : f32
    %223 = vector.broadcast %cst_112 : f32 to vector<16x128xf32>
    %224 = arith.maximumf %222, %223 : vector<16x128xf32>
    %c0_113 = arith.constant 0 : index
    %c0_114 = arith.constant 0 : index
    %225 = vector.load %arg15[%c0_113, %c0_114] : memref<8x16xf32, #tpu.memory_space<vmem>>, vector<8x16xf32>
    %cst_115 = arith.constant dense<0.000000e+00> : vector<8x128xf32>
    %226 = tpu.matmul %225, %224, %cst_115 {dimension_numbers = #tpu.dot_dimension_numbers<[1], [0], [0], [1], [0, 0, 1, 1], [], []>} : vector<8x16xf32>, vector<16x128xf32>, vector<8x128xf32> -> vector<8x128xf32>
    %c0_116 = arith.constant 0 : index
    %c0_117 = arith.constant 0 : index
    %227 = vector.load %arg16[%c0_116, %c0_117] : memref<8x1xf32, #tpu.memory_space<vmem>>, vector<8x1xf32>
    %228 = vector.broadcast %227 : vector<8x1xf32> to vector<8x128xf32>
    %229 = arith.addf %226, %228 : vector<8x128xf32>
    %c0_118 = arith.constant 0 : index
    %c0_119 = arith.constant 0 : index
    %230 = vector.load %arg17[%c0_118, %c0_119] : memref<8x128xf32, #tpu.memory_space<vmem>>, vector<8x128xf32>
    tpu.vector_store %arg17[%c0_118, %c0_119], %229 {strides = array<i32>} : memref<8x128xf32, #tpu.memory_space<vmem>>, vector<8x128xf32>,
    return
  }
}

</mosaic_0001>

<llo_original>
// kernel: tpu_custom_call.1
$region0: #{tpu_custom_call.1}
  #allocation0 [shape = 'u32[]', space=smem, size = 0x4, offset = 0x4, fixed_abs, tag = 'smem constant byte address 0x4 - core index']
  #allocation1 [shape = 'u32[144,128]{1,0:T(1,128)}', space=vmem, size = 0x12000, scoped, tag = 'internal scratch']
  %s0 = inlined_call_operand.vmem [shape: f32[8,128], index: 0, kind: input, shape index: {}]
  %s1 = inlined_call_operand.vmem [shape: f32[3,16,8], index: 1, kind: input, shape index: {}]
  %s2 = inlined_call_operand.vmem [shape: f32[16,1], index: 2, kind: input, shape index: {}]
  %s3 = inlined_call_operand.vmem [shape: f32[16,1], index: 3, kind: input, shape index: {}]
  %s4 = inlined_call_operand.vmem [shape: f32[3,16,16], index: 4, kind: input, shape index: {}]
  %s5 = inlined_call_operand.vmem [shape: f32[16,1], index: 5, kind: input, shape index: {}]
  %s6 = inlined_call_operand.vmem [shape: f32[16,1], index: 6, kind: input, shape index: {}]
  %s7 = inlined_call_operand.vmem [shape: f32[16,8], index: 7, kind: input, shape index: {}]
  %s8 = inlined_call_operand.vmem [shape: f32[16,1], index: 8, kind: input, shape index: {}]
  %s9 = inlined_call_operand.vmem [shape: f32[3,16,16], index: 9, kind: input, shape index: {}]
  %s10 = inlined_call_operand.vmem [shape: f32[16,1], index: 10, kind: input, shape index: {}]
  %s11 = inlined_call_operand.vmem [shape: f32[16,1], index: 11, kind: input, shape index: {}]
  %s12 = inlined_call_operand.vmem [shape: f32[3,16,16], index: 12, kind: input, shape index: {}]
  %s13 = inlined_call_operand.vmem [shape: f32[16,1], index: 13, kind: input, shape index: {}]
  %s14 = inlined_call_operand.vmem [shape: f32[16,1], index: 14, kind: input, shape index: {}]
  %s15 = inlined_call_operand.vmem [shape: f32[8,16], index: 15, kind: input, shape index: {}]
  %s16 = inlined_call_operand.vmem [shape: f32[8,1], index: 16, kind: input, shape index: {}]
  %s17 = inlined_call_operand.hbm [shape: f32[8,128], index: 17, kind: output, shape index: {}]
  %s18 = sld [smem:[#allocation0]]
  $region78: #{tpu_custom_call.1} parent=0
    _
  %s20 = ssub.s32 1, %s18
  %s21 = scalar_select 0, %s20, %s18
  $region1: #{tpu_custom_call.1} parent=0
    #allocation2 [shape = 'u8[4096]{0}', space=vmem, size = 0x1000, scoped, tag = 'output window, operand 0, single buffered']
    #allocation3 [shape = 's32[1]{0}', space=sflag, size = 0x4, scoped, tag = 'scoped memory for tpu_custom_call.1']
    %22 = vsyncpa [#allocation3], 0
    // Predicated region
    $region2: #{tpu_custom_call.1} parent=1 // pred_check
      _
    $region3: #{tpu_custom_call.1} parent=1 // pred_check_branch
      %24 = sbr.rel (0) target = $region5
    $region4: #{tpu_custom_call.1} parent=1 // pred_region
      _
    $region5: #{tpu_custom_call.1} parent=1 // pred_fallthru
      _
    // Predicated region
    $region6: #{tpu_custom_call.1} parent=1 // pred_check
      _
    $region7: #{tpu_custom_call.1} parent=1 // pred_check_branch
      %26 = sbr.rel (0) target = $region9
    $region8: #{tpu_custom_call.1} parent=1 // pred_region
      _
    $region9: #{tpu_custom_call.1} parent=1 // pred_fallthru
      _
    // Predicated region
    $region10: #{tpu_custom_call.1} parent=1 // pred_check
      _
    $region11: #{tpu_custom_call.1} parent=1 // pred_check_branch
      %28 = sbr.rel (0) target = $region13
    $region12: #{tpu_custom_call.1} parent=1 // pred_region
      _
    $region13: #{tpu_custom_call.1} parent=1 // pred_fallthru
      _
    // Predicated region
    $region14: #{tpu_custom_call.1} parent=1 // pred_check
      _
    $region15: #{tpu_custom_call.1} parent=1 // pred_check_branch
      %30 = sbr.rel (0) target = $region17
    $region16: #{tpu_custom_call.1} parent=1 // pred_region
      _
    $region17: #{tpu_custom_call.1} parent=1 // pred_fallthru
      _
    // Predicated region
    $region18: #{tpu_custom_call.1} parent=1 // pred_check
      _
    $region19: #{tpu_custom_call.1} parent=1 // pred_check_branch
      %32 = sbr.rel (0) target = $region21
    $region20: #{tpu_custom_call.1} parent=1 // pred_region
      _
    $region21: #{tpu_custom_call.1} parent=1 // pred_fallthru
      _
    // Predicated region
    $region22: #{tpu_custom_call.1} parent=1 // pred_check
      _
    $region23: #{tpu_custom_call.1} parent=1 // pred_check_branch
      %34 = sbr.rel (0) target = $region25
    $region24: #{tpu_custom_call.1} parent=1 // pred_region
      _
    $region25: #{tpu_custom_call.1} parent=1 // pred_fallthru
      _
    // Predicated region
    $region26: #{tpu_custom_call.1} parent=1 // pred_check
      _
    $region27: #{tpu_custom_call.1} parent=1 // pred_check_branch
      %36 = sbr.rel (0) target = $region29
    $region28: #{tpu_custom_call.1} parent=1 // pred_region
      _
    $region29: #{tpu_custom_call.1} parent=1 // pred_fallthru
      _
    // Predicated region
    $region30: #{tpu_custom_call.1} parent=1 // pred_check
      _
    $region31: #{tpu_custom_call.1} parent=1 // pred_check_branch
      %38 = sbr.rel (0) target = $region33
    $region32: #{tpu_custom_call.1} parent=1 // pred_region
      _
    $region33: #{tpu_custom_call.1} parent=1 // pred_fallthru
      _
    // Predicated region
    $region34: #{tpu_custom_call.1} parent=1 // pred_check
      _
    $region35: #{tpu_custom_call.1} parent=1 // pred_check_branch
      %40 = sbr.rel (0) target = $region37
    $region36: #{tpu_custom_call.1} parent=1 // pred_region
      _
    $region37: #{tpu_custom_call.1} parent=1 // pred_fallthru
      _
    // Predicated region
    $region38: #{tpu_custom_call.1} parent=1 // pred_check
      _
    $region39: #{tpu_custom_call.1} parent=1 // pred_check_branch
      %42 = sbr.rel (0) target = $region41
    $region40: #{tpu_custom_call.1} parent=1 // pred_region
      _
    $region41: #{tpu_custom_call.1} parent=1 // pred_fallthru
      _
    // Predicated region
    $region42: #{tpu_custom_call.1} parent=1 // pred_check
      _
    $region43: #{tpu_custom_call.1} parent=1 // pred_check_branch
      %44 = sbr.rel (0) target = $region45
    $region44: #{tpu_custom_call.1} parent=1 // pred_region
      _
    $region45: #{tpu_custom_call.1} parent=1 // pred_fallthru
      _
    // Predicated region
    $region46: #{tpu_custom_call.1} parent=1 // pred_check
      _
    $region47: #{tpu_custom_call.1} parent=1 // pred_check_branch
      %46 = sbr.rel (0) target = $region49
    $region48: #{tpu_custom_call.1} parent=1 // pred_region
      _
    $region49: #{tpu_custom_call.1} parent=1 // pred_fallthru
      _
    // Predicated region
    $region50: #{tpu_custom_call.1} parent=1 // pred_check
      _
    $region51: #{tpu_custom_call.1} parent=1 // pred_check_branch
      %48 = sbr.rel (0) target = $region53
    $region52: #{tpu_custom_call.1} parent=1 // pred_region
      _
    $region53: #{tpu_custom_call.1} parent=1 // pred_fallthru
      _
    // Predicated region
    $region54: #{tpu_custom_call.1} parent=1 // pred_check
      _
    $region55: #{tpu_custom_call.1} parent=1 // pred_check_branch
      %50 = sbr.rel (0) target = $region57
    $region56: #{tpu_custom_call.1} parent=1 // pred_region
      _
    $region57: #{tpu_custom_call.1} parent=1 // pred_fallthru
      _
    // Predicated region
    $region58: #{tpu_custom_call.1} parent=1 // pred_check
      _
    $region59: #{tpu_custom_call.1} parent=1 // pred_check_branch
      %52 = sbr.rel (0) target = $region61
    $region60: #{tpu_custom_call.1} parent=1 // pred_region
      _
    $region61: #{tpu_custom_call.1} parent=1 // pred_fallthru
      _
    // Predicated region
    $region62: #{tpu_custom_call.1} parent=1 // pred_check
      _
    $region63: #{tpu_custom_call.1} parent=1 // pred_check_branch
      %54 = sbr.rel (0) target = $region65
    $region64: #{tpu_custom_call.1} parent=1 // pred_region
      _
    $region65: #{tpu_custom_call.1} parent=1 // pred_fallthru
      _
    // Predicated region
    $region66: #{tpu_custom_call.1} parent=1 // pred_check
      _
    $region67: #{tpu_custom_call.1} parent=1 // pred_check_branch
      %56 = sbr.rel (0) target = $region69
    $region68: #{tpu_custom_call.1} parent=1 // pred_region
      _
    $region69: #{tpu_custom_call.1} parent=1 // pred_fallthru
      _
    %v57 = vld [vmem:[%s0] sm:$0xff]
    %v58 = vlaneseq
    %v59 = vand.u32 %v58, 127
    %vm60 = vcmp.lt.s32.totalorder %v59, 0
    %v61 = vsub.s32 0, %v59
    %v62 = vsel %vm60, %v61, %v59
    %v63 = vshrl.u32 %v62, 6
    %v64 = vand.u32 %v62, 63
    %v65 = vsub.s32 0, %v64
    %v66 = vsel %vm60, %v65, %v64
    %vm67 = vcmp.ne.s32.totalorder %v66, 0
    %vm68 = vcmp.lt.s32.totalorder %v66, 0
    %vm69 = vmand %vm68, %vm67
    %v70 = vadd.s32 %v66, 64
    %v71 = vsel %vm69, %v70, %v66
    %v72 = vld [vmem:[%s7] sm:$0xff]
    %v73 = vld [vmem:[%s7 + $0x8] sm:$0xff]
    %v74 = vld [vmem:[%s8] sm:$0xff]
    %v75 = vld [vmem:[%s8 + $0x8] sm:$0xff]
    %77 = vset.pattern.permute.xlu0 0
    %78 = vperm.xlu0 %77, %v74
    %v79 = vpop.permute.xlu0 %78
    %82 = vset.pattern.permute.xlu0 0
    %83 = vperm.xlu0 %82, %v75
    %v84 = vpop.permute.xlu0 %83
    %vm86 = vcmask 64512
    %v88 = vsel %vm86, %v72, 0
    %v91 = vsel %vm86, %v73, 0
    %93 = vmatprep.subr.mxu0 0.0
    %94 = vmatpush1.msra.mxu0 0.0
    %95 = vmatprep.subr.mxu0 0.0
    %96 = vmatpush1.msra.mxu0 0.0
    %97 = vmatprep.subr.mxu0 0.0
    %98 = vmatpush1.msra.mxu0 0.0
    %99 = vmatprep.subr.mxu0 0.0
    %100 = vmatpush1.msra.mxu0 0.0
    %101 = vmatprep.subr.mxu0 0.0
    %102 = vmatpush1.msra.mxu0 0.0
    %103 = vmatprep.subr.mxu0 0.0
    %104 = vmatpush1.msra.mxu0 0.0
    %105 = vmatprep.subr.mxu0 0.0
    %106 = vmatpush1.msra.mxu0 0.0
    %107 = vmatprep.subr.mxu0 0.0
    %108 = vmatpush1.msra.mxu0 0.0
    %109 = vmatprep.subr.mxu0 0.0
    %110 = vmatpush1.msra.mxu0 0.0
    %111 = vmatprep.subr.mxu0 0.0
    %112 = vmatpush1.msra.mxu0 0.0
    %113 = vmatprep.subr.mxu0 0.0
    %114 = vmatpush1.msra.mxu0 0.0
    %115 = vmatprep.subr.mxu0 0.0
    %116 = vmatpush1.msra.mxu0 0.0
    %117 = vmatprep.subr.mxu0 0.0
    %118 = vmatpush1.msra.mxu0 0.0
    %119 = vmatprep.subr.mxu0 0.0
    %120 = vmatpush1.msra.mxu0 0.0
    %121 = vmatprep.subr.mxu0 0.0
    %122 = vmatpush1.msra.mxu0 0.0
    %123 = vmatprep.subr.mxu0 0.0
    %124 = vmatpush1.msra.mxu0 %v57
    %125 = vmatprep.subr.mxu0 0.0
    %126 = vmatpush2.msra.mxu0 0.0
    %127 = vmatprep.subr.mxu0 0.0
    %128 = vmatpush2.msra.mxu0 0.0
    %129 = vmatprep.subr.mxu0 0.0
    %130 = vmatpush2.msra.mxu0 0.0
    %131 = vmatprep.subr.mxu0 0.0
    %132 = vmatpush2.msra.mxu0 0.0
    %133 = vmatprep.subr.mxu0 0.0
    %134 = vmatpush2.msra.mxu0 0.0
    %135 = vmatprep.subr.mxu0 0.0
    %136 = vmatpush2.msra.mxu0 0.0
    %137 = vmatprep.subr.mxu0 0.0
    %138 = vmatpush2.msra.mxu0 0.0
    %139 = vmatprep.subr.mxu0 0.0
    %140 = vmatpush2.msra.mxu0 0.0
    %141 = vmatprep.subr.mxu0 0.0
    %142 = vmatpush2.msra.mxu0 0.0
    %143 = vmatprep.subr.mxu0 0.0
    %144 = vmatpush2.msra.mxu0 0.0
    %145 = vmatprep.subr.mxu0 0.0
    %146 = vmatpush2.msra.mxu0 0.0
    %147 = vmatprep.subr.mxu0 0.0
    %148 = vmatpush2.msra.mxu0 0.0
    %149 = vmatprep.subr.mxu0 0.0
    %150 = vmatpush2.msra.mxu0 0.0
    %151 = vmatprep.subr.mxu0 0.0
    %152 = vmatpush2.msra.mxu0 0.0
    %153 = vmatprep.subr.mxu0 0.0
    %154 = vmatpush2.msra.mxu0 0.0
    %155 = vmatprep.subr.mxu0 0.0
    %156 = vmatpush2.msra.mxu0 0.0
    %157 = vmatprep.mubr.f32.mxu0 0.0
    %158 = vmatmul.mubr.f32.gmra.mxu0 %v88
    %v159 = vpop.f32.mrf.mxu0
    %v160 = vadd.f32 %v79, %v159
    %v161 = vpop.f32.mrf.mxu0
    %162 = vmatprep.mubr.f32.mxu0 0.0
    %163 = vmatmul.mubr.f32.gmra.mxu0 %v91
    %v164 = vpop.f32.mrf.mxu0
    %v165 = vadd.f32 %v84, %v164
    %v166 = vpop.f32.mrf.mxu0
    %167 = vdwg.mxu0
    %s168 = scalar_lea.vmem %s1, 16
    %v169 = vld [vmem:[%s168] sm:$0xff]
    %v170 = vld [vmem:[%s168 + $0x8] sm:$0xff]
    %vm171 = vcmp.ge.s32.totalorder %v71, 1
    %172 = vrot.lane.b32.xlu0 %v57, 1
    %v173 = vpop.permute.xlu0 %172
    %v174 = vsel %vm171, 1, 0
    %vm175 = vcmp.eq.s32.totalorder %v174, 1
    %v176 = vsel %vm175, %v173, 0.0
    %v177 = vld [vmem:[%s1] sm:$0xff]
    %v178 = vld [vmem:[%s1 + $0x8] sm:$0xff]
    %v180 = vsel %vm86, %v177, 0
    %v183 = vsel %vm86, %v178, 0
    %185 = vmatprep.subr.mxu0 0.0
    %186 = vmatpush1.msra.mxu0 0.0
    %187 = vmatprep.subr.mxu0 0.0
    %188 = vmatpush1.msra.mxu0 0.0
    %189 = vmatprep.subr.mxu0 0.0
    %190 = vmatpush1.msra.mxu0 0.0
    %191 = vmatprep.subr.mxu0 0.0
    %192 = vmatpush1.msra.mxu0 0.0
    %193 = vmatprep.subr.mxu0 0.0
    %194 = vmatpush1.msra.mxu0 0.0
    %195 = vmatprep.subr.mxu0 0.0
    %196 = vmatpush1.msra.mxu0 0.0
    %197 = vmatprep.subr.mxu0 0.0
    %198 = vmatpush1.msra.mxu0 0.0
    %199 = vmatprep.subr.mxu0 0.0
    %200 = vmatpush1.msra.mxu0 0.0
    %201 = vmatprep.subr.mxu0 0.0
    %202 = vmatpush1.msra.mxu0 0.0
    %203 = vmatprep.subr.mxu0 0.0
    %204 = vmatpush1.msra.mxu0 0.0
    %205 = vmatprep.subr.mxu0 0.0
    %206 = vmatpush1.msra.mxu0 0.0
    %207 = vmatprep.subr.mxu0 0.0
    %208 = vmatpush1.msra.mxu0 0.0
    %209 = vmatprep.subr.mxu0 0.0
    %210 = vmatpush1.msra.mxu0 0.0
    %211 = vmatprep.subr.mxu0 0.0
    %212 = vmatpush1.msra.mxu0 0.0
    %213 = vmatprep.subr.mxu0 0.0
    %214 = vmatpush1.msra.mxu0 0.0
    %215 = vmatprep.subr.mxu0 0.0
    %216 = vmatpush1.msra.mxu0 %v176
    %217 = vmatprep.subr.mxu0 0.0
    %218 = vmatpush2.msra.mxu0 0.0
    %219 = vmatprep.subr.mxu0 0.0
    %220 = vmatpush2.msra.mxu0 0.0
    %221 = vmatprep.subr.mxu0 0.0
    %222 = vmatpush2.msra.mxu0 0.0
    %223 = vmatprep.subr.mxu0 0.0
    %224 = vmatpush2.msra.mxu0 0.0
    %225 = vmatprep.subr.mxu0 0.0
    %226 = vmatpush2.msra.mxu0 0.0
    %227 = vmatprep.subr.mxu0 0.0
    %228 = vmatpush2.msra.mxu0 0.0
    %229 = vmatprep.subr.mxu0 0.0
    %230 = vmatpush2.msra.mxu0 0.0
    %231 = vmatprep.subr.mxu0 0.0
    %232 = vmatpush2.msra.mxu0 0.0
    %233 = vmatprep.subr.mxu0 0.0
    %234 = vmatpush2.msra.mxu0 0.0
    %235 = vmatprep.subr.mxu0 0.0
    %236 = vmatpush2.msra.mxu0 0.0
    %237 = vmatprep.subr.mxu0 0.0
    %238 = vmatpush2.msra.mxu0 0.0
    %239 = vmatprep.subr.mxu0 0.0
    %240 = vmatpush2.msra.mxu0 0.0
    %241 = vmatprep.subr.mxu0 0.0
    %242 = vmatpush2.msra.mxu0 0.0
    %243 = vmatprep.subr.mxu0 0.0
    %244 = vmatpush2.msra.mxu0 0.0
    %245 = vmatprep.subr.mxu0 0.0
    %246 = vmatpush2.msra.mxu0 0.0
    %247 = vmatprep.subr.mxu0 0.0
    %248 = vmatpush2.msra.mxu0 0.0
    %249 = vmatprep.mubr.f32.mxu0 0.0
    %250 = vmatmul.mubr.f32.gmra.mxu0 %v180
    %v251 = vpop.f32.mrf.mxu0
    %v252 = vadd.f32 0.0, %v251
    %v253 = vpop.f32.mrf.mxu0
    %254 = vmatprep.mubr.f32.mxu0 0.0
    %255 = vmatmul.mubr.f32.gmra.mxu0 %v183
    %v256 = vpop.f32.mrf.mxu0
    %v257 = vadd.f32 0.0, %v256
    %v258 = vpop.f32.mrf.mxu0
    %259 = vdwg.mxu0
    %v261 = vsel %vm86, %v169, 0
    %v264 = vsel %vm86, %v170, 0
    %266 = vmatprep.subr.mxu0 0.0
    %267 = vmatpush1.msra.mxu0 0.0
    %268 = vmatprep.subr.mxu0 0.0
    %269 = vmatpush1.msra.mxu0 0.0
    %270 = vmatprep.subr.mxu0 0.0
    %271 = vmatpush1.msra.mxu0 0.0
    %272 = vmatprep.subr.mxu0 0.0
    %273 = vmatpush1.msra.mxu0 0.0
    %274 = vmatprep.subr.mxu0 0.0
    %275 = vmatpush1.msra.mxu0 0.0
    %276 = vmatprep.subr.mxu0 0.0
    %277 = vmatpush1.msra.mxu0 0.0
    %278 = vmatprep.subr.mxu0 0.0
    %279 = vmatpush1.msra.mxu0 0.0
    %280 = vmatprep.subr.mxu0 0.0
    %281 = vmatpush1.msra.mxu0 0.0
    %282 = vmatprep.subr.mxu0 0.0
    %283 = vmatpush1.msra.mxu0 0.0
    %284 = vmatprep.subr.mxu0 0.0
    %285 = vmatpush1.msra.mxu0 0.0
    %286 = vmatprep.subr.mxu0 0.0
    %287 = vmatpush1.msra.mxu0 0.0
    %288 = vmatprep.subr.mxu0 0.0
    %289 = vmatpush1.msra.mxu0 0.0
    %290 = vmatprep.subr.mxu0 0.0
    %291 = vmatpush1.msra.mxu0 0.0
    %292 = vmatprep.subr.mxu0 0.0
    %293 = vmatpush1.msra.mxu0 0.0
    %294 = vmatprep.subr.mxu0 0.0
    %295 = vmatpush1.msra.mxu0 0.0
    %296 = vmatprep.subr.mxu0 0.0
    %297 = vmatpush1.msra.mxu0 %v57
    %298 = vmatprep.subr.mxu0 0.0
    %299 = vmatpush2.msra.mxu0 0.0
    %300 = vmatprep.subr.mxu0 0.0
    %301 = vmatpush2.msra.mxu0 0.0
    %302 = vmatprep.subr.mxu0 0.0
    %303 = vmatpush2.msra.mxu0 0.0
    %304 = vmatprep.subr.mxu0 0.0
    %305 = vmatpush2.msra.mxu0 0.0
    %306 = vmatprep.subr.mxu0 0.0
    %307 = vmatpush2.msra.mxu0 0.0
    %308 = vmatprep.subr.mxu0 0.0
    %309 = vmatpush2.msra.mxu0 0.0
    %310 = vmatprep.subr.mxu0 0.0
    %311 = vmatpush2.msra.mxu0 0.0
    %312 = vmatprep.subr.mxu0 0.0
    %313 = vmatpush2.msra.mxu0 0.0
    %314 = vmatprep.subr.mxu0 0.0
    %315 = vmatpush2.msra.mxu0 0.0
    %316 = vmatprep.subr.mxu0 0.0
    %317 = vmatpush2.msra.mxu0 0.0
    %318 = vmatprep.subr.mxu0 0.0
    %319 = vmatpush2.msra.mxu0 0.0
    %320 = vmatprep.subr.mxu0 0.0
    %321 = vmatpush2.msra.mxu0 0.0
    %322 = vmatprep.subr.mxu0 0.0
    %323 = vmatpush2.msra.mxu0 0.0
    %324 = vmatprep.subr.mxu0 0.0
    %325 = vmatpush2.msra.mxu0 0.0
    %326 = vmatprep.subr.mxu0 0.0
    %327 = vmatpush2.msra.mxu0 0.0
    %328 = vmatprep.subr.mxu0 0.0
    %329 = vmatpush2.msra.mxu0 0.0
    %330 = vmatprep.mubr.f32.mxu0 0.0
    %331 = vmatmul.mubr.f32.gmra.mxu0 %v261
    %v332 = vpop.f32.mrf.mxu0
    %v333 = vadd.f32 %v252, %v332
    %v334 = vpop.f32.mrf.mxu0
    %335 = vmatprep.mubr.f32.mxu0 0.0
    %336 = vmatmul.mubr.f32.gmra.mxu0 %v264
    %v337 = vpop.f32.mrf.mxu0
    %v338 = vadd.f32 %v257, %v337
    %v339 = vpop.f32.mrf.mxu0
    %340 = vdwg.mxu0
    %vm341 = vcmp.lt.s32.totalorder %v71, 63
    %342 = vrot.lane.b32.xlu0 %v57, 127
    %v343 = vpop.permute.xlu0 %342
    %v344 = vsel %vm341, 1, 0
    %vm345 = vcmp.eq.s32.totalorder %v344, 1
    %v346 = vsel %vm345, %v343, 0.0
    %s347 = scalar_lea.vmem %s1, 32
    %v348 = vld [vmem:[%s347] sm:$0xff]
    %v349 = vld [vmem:[%s347 + $0x8] sm:$0xff]
    %v351 = vsel %vm86, %v348, 0
    %v354 = vsel %vm86, %v349, 0
    %356 = vmatprep.subr.mxu0 0.0
    %357 = vmatpush1.msra.mxu0 0.0
    %358 = vmatprep.subr.mxu0 0.0
    %359 = vmatpush1.msra.mxu0 0.0
    %360 = vmatprep.subr.mxu0 0.0
    %361 = vmatpush1.msra.mxu0 0.0
    %362 = vmatprep.subr.mxu0 0.0
    %363 = vmatpush1.msra.mxu0 0.0
    %364 = vmatprep.subr.mxu0 0.0
    %365 = vmatpush1.msra.mxu0 0.0
    %366 = vmatprep.subr.mxu0 0.0
    %367 = vmatpush1.msra.mxu0 0.0
    %368 = vmatprep.subr.mxu0 0.0
    %369 = vmatpush1.msra.mxu0 0.0
    %370 = vmatprep.subr.mxu0 0.0
    %371 = vmatpush1.msra.mxu0 0.0
    %372 = vmatprep.subr.mxu0 0.0
    %373 = vmatpush1.msra.mxu0 0.0
    %374 = vmatprep.subr.mxu0 0.0
    %375 = vmatpush1.msra.mxu0 0.0
    %376 = vmatprep.subr.mxu0 0.0
    %377 = vmatpush1.msra.mxu0 0.0
    %378 = vmatprep.subr.mxu0 0.0
    %379 = vmatpush1.msra.mxu0 0.0
    %380 = vmatprep.subr.mxu0 0.0
    %381 = vmatpush1.msra.mxu0 0.0
    %382 = vmatprep.subr.mxu0 0.0
    %383 = vmatpush1.msra.mxu0 0.0
    %384 = vmatprep.subr.mxu0 0.0
    %385 = vmatpush1.msra.mxu0 0.0
    %386 = vmatprep.subr.mxu0 0.0
    %387 = vmatpush1.msra.mxu0 %v346
    %388 = vmatprep.subr.mxu0 0.0
    %389 = vmatpush2.msra.mxu0 0.0
    %390 = vmatprep.subr.mxu0 0.0
    %391 = vmatpush2.msra.mxu0 0.0
    %392 = vmatprep.subr.mxu0 0.0
    %393 = vmatpush2.msra.mxu0 0.0
    %394 = vmatprep.subr.mxu0 0.0
    %395 = vmatpush2.msra.mxu0 0.0
    %396 = vmatprep.subr.mxu0 0.0
    %397 = vmatpush2.msra.mxu0 0.0
    %398 = vmatprep.subr.mxu0 0.0
    %399 = vmatpush2.msra.mxu0 0.0
    %400 = vmatprep.subr.mxu0 0.0
    %401 = vmatpush2.msra.mxu0 0.0
    %402 = vmatprep.subr.mxu0 0.0
    %403 = vmatpush2.msra.mxu0 0.0
    %404 = vmatprep.subr.mxu0 0.0
    %405 = vmatpush2.msra.mxu0 0.0
    %406 = vmatprep.subr.mxu0 0.0
    %407 = vmatpush2.msra.mxu0 0.0
    %408 = vmatprep.subr.mxu0 0.0
    %409 = vmatpush2.msra.mxu0 0.0
    %410 = vmatprep.subr.mxu0 0.0
    %411 = vmatpush2.msra.mxu0 0.0
    %412 = vmatprep.subr.mxu0 0.0
    %413 = vmatpush2.msra.mxu0 0.0
    %414 = vmatprep.subr.mxu0 0.0
    %415 = vmatpush2.msra.mxu0 0.0
    %416 = vmatprep.subr.mxu0 0.0
    %417 = vmatpush2.msra.mxu0 0.0
    %418 = vmatprep.subr.mxu0 0.0
    %419 = vmatpush2.msra.mxu0 0.0
    %420 = vmatprep.mubr.f32.mxu0 0.0
    %421 = vmatmul.mubr.f32.gmra.mxu0 %v351
    %v422 = vpop.f32.mrf.mxu0
    %v423 = vadd.f32 0.0, %v422
    %v424 = vpop.f32.mrf.mxu0
    %425 = vmatprep.mubr.f32.mxu0 0.0
    %426 = vmatmul.mubr.f32.gmra.mxu0 %v354
    %v427 = vpop.f32.mrf.mxu0
    %v428 = vadd.f32 0.0, %v427
    %v429 = vpop.f32.mrf.mxu0
    %430 = vdwg.mxu0
    %v431 = vadd.f32 %v333, %v423
    %v432 = vadd.f32 %v338, %v428
    %433 = vadd.xlane.f32.xlu0 %v431
    %v434 = vpop.xlane.xlu0 %433
    %435 = vadd.xlane.f32.xlu0 %v432
    %v436 = vpop.xlane.xlu0 %435
    %v437 = vmul.f32 %v434, 0.0078125
    %v438 = vmul.f32 %v436, 0.0078125
    %v439 = vmul.f32 %v431, %v431
    %v440 = vmul.f32 %v432, %v432
    %441 = vadd.xlane.f32.xlu0 %v439
    %v442 = vpop.xlane.xlu0 %441
    %443 = vadd.xlane.f32.xlu0 %v440
    %v444 = vpop.xlane.xlu0 %443
    %v445 = vmul.f32 %v442, 0.0078125
    %v446 = vmul.f32 %v444, 0.0078125
    %v447 = vmul.f32 %v437, %v437
    %v448 = vmul.f32 %v438, %v438
    %v449 = vsub.f32 %v445, %v447
    %v450 = vsub.f32 %v446, %v448
    %v451 = vld [vmem:[%s2] sm:$0xff]
    %v452 = vld [vmem:[%s2 + $0x8] sm:$0xff]
    %v453 = vadd.f32 %v449, 1e-05
    %v454 = vadd.f32 %v450, 1e-05
    %v455 = vrsqrt.pop %v453
    %v456 = vrsqrt.pop %v454
    %v457 = vmul.f32 %v451, %v455
    %v458 = vmul.f32 %v452, %v456
    %v459 = vld [vmem:[%s3] sm:$0xff]
    %v460 = vld [vmem:[%s3 + $0x8] sm:$0xff]
    %v461 = vmul.f32 %v437, %v457
    %v462 = vmul.f32 %v438, %v458
    %v463 = vsub.f32 %v459, %v461
    %v464 = vsub.f32 %v460, %v462
    %466 = vset.pattern.permute.xlu0 0
    %467 = vperm.xlu0 %466, %v457
    %v468 = vpop.permute.xlu0 %467
    %471 = vset.pattern.permute.xlu0 0
    %472 = vperm.xlu0 %471, %v458
    %v473 = vpop.permute.xlu0 %472
    %v475 = vmul.f32 %v431, %v468
    %v476 = vmul.f32 %v432, %v473
    %478 = vset.pattern.permute.xlu0 0
    %479 = vperm.xlu0 %478, %v463
    %v480 = vpop.permute.xlu0 %479
    %483 = vset.pattern.permute.xlu0 0
    %484 = vperm.xlu0 %483, %v464
    %v485 = vpop.permute.xlu0 %484
    %v487 = vadd.f32 %v475, %v480
    %v488 = vadd.f32 %v476, %v485
    %v489 = vmax.f32 %v487, 0.0
    %v490 = vmax.f32 %v488, 0.0
    %s491 = scalar_lea.vmem %s4, 16
    %v492 = vld [vmem:[%s491] sm:$0xff]
    %v493 = vld [vmem:[%s491 + $0x8] sm:$0xff]
    %494 = vrot.lane.b32.xlu0 %v489, 1
    %v495 = vpop.permute.xlu0 %494
    %496 = vrot.lane.b32.xlu0 %v490, 1
    %v497 = vpop.permute.xlu0 %496
    %v498 = vsel %vm175, %v495, 0.0
    %v499 = vsel %vm175, %v497, 0.0
    %v500 = vld [vmem:[%s4] sm:$0xff]
    %v501 = vld [vmem:[%s4 + $0x8] sm:$0xff]
    %vm502 = vcmask 130048
    %v504 = vsel %vm502, %v500, 0
    %v507 = vsel %vm502, %v501, 0
    %509 = vmatprep.subr.mxu0 0.0
    %510 = vmatpush1.msra.mxu0 0.0
    %511 = vmatprep.subr.mxu0 0.0
    %512 = vmatpush1.msra.mxu0 0.0
    %513 = vmatprep.subr.mxu0 0.0
    %514 = vmatpush1.msra.mxu0 0.0
    %515 = vmatprep.subr.mxu0 0.0
    %516 = vmatpush1.msra.mxu0 0.0
    %517 = vmatprep.subr.mxu0 0.0
    %518 = vmatpush1.msra.mxu0 0.0
    %519 = vmatprep.subr.mxu0 0.0
    %520 = vmatpush1.msra.mxu0 0.0
    %521 = vmatprep.subr.mxu0 0.0
    %522 = vmatpush1.msra.mxu0 0.0
    %523 = vmatprep.subr.mxu0 0.0
    %524 = vmatpush1.msra.mxu0 0.0
    %525 = vmatprep.subr.mxu0 0.0
    %526 = vmatpush1.msra.mxu0 0.0
    %527 = vmatprep.subr.mxu0 0.0
    %528 = vmatpush1.msra.mxu0 0.0
    %529 = vmatprep.subr.mxu0 0.0
    %530 = vmatpush1.msra.mxu0 0.0
    %531 = vmatprep.subr.mxu0 0.0
    %532 = vmatpush1.msra.mxu0 0.0
    %533 = vmatprep.subr.mxu0 0.0
    %534 = vmatpush1.msra.mxu0 0.0
    %535 = vmatprep.subr.mxu0 0.0
    %536 = vmatpush1.msra.mxu0 0.0
    %537 = vmatprep.subr.mxu0 0.0
    %538 = vmatpush1.msra.mxu0 %v499
    %539 = vmatprep.subr.mxu0 0.0
    %540 = vmatpush1.msra.mxu0 %v498
    %541 = vmatprep.subr.mxu0 0.0
    %542 = vmatpush2.msra.mxu0 0.0
    %543 = vmatprep.subr.mxu0 0.0
    %544 = vmatpush2.msra.mxu0 0.0
    %545 = vmatprep.subr.mxu0 0.0
    %546 = vmatpush2.msra.mxu0 0.0
    %547 = vmatprep.subr.mxu0 0.0
    %548 = vmatpush2.msra.mxu0 0.0
    %549 = vmatprep.subr.mxu0 0.0
    %550 = vmatpush2.msra.mxu0 0.0
    %551 = vmatprep.subr.mxu0 0.0
    %552 = vmatpush2.msra.mxu0 0.0
    %553 = vmatprep.subr.mxu0 0.0
    %554 = vmatpush2.msra.mxu0 0.0
    %555 = vmatprep.subr.mxu0 0.0
    %556 = vmatpush2.msra.mxu0 0.0
    %557 = vmatprep.subr.mxu0 0.0
    %558 = vmatpush2.msra.mxu0 0.0
    %559 = vmatprep.subr.mxu0 0.0
    %560 = vmatpush2.msra.mxu0 0.0
    %561 = vmatprep.subr.mxu0 0.0
    %562 = vmatpush2.msra.mxu0 0.0
    %563 = vmatprep.subr.mxu0 0.0
    %564 = vmatpush2.msra.mxu0 0.0
    %565 = vmatprep.subr.mxu0 0.0
    %566 = vmatpush2.msra.mxu0 0.0
    %567 = vmatprep.subr.mxu0 0.0
    %568 = vmatpush2.msra.mxu0 0.0
    %569 = vmatprep.subr.mxu0 0.0
    %570 = vmatpush2.msra.mxu0 0.0
    %571 = vmatprep.subr.mxu0 0.0
    %572 = vmatpush2.msra.mxu0 0.0
    %573 = vmatprep.mubr.f32.mxu0 0.0
    %574 = vmatmul.mubr.f32.gmra.mxu0 %v504
    %v575 = vpop.f32.mrf.mxu0
    %v576 = vadd.f32 0.0, %v575
    %v577 = vpop.f32.mrf.mxu0
    %578 = vmatprep.mubr.f32.mxu0 0.0
    %579 = vmatmul.mubr.f32.gmra.mxu0 %v507
    %v580 = vpop.f32.mrf.mxu0
    %v581 = vadd.f32 0.0, %v580
    %v582 = vpop.f32.mrf.mxu0
    %583 = vdwg.mxu0
    %v585 = vsel %vm502, %v492, 0
    %v588 = vsel %vm502, %v493, 0
    %590 = vmatprep.subr.mxu0 0.0
    %591 = vmatpush1.msra.mxu0 0.0
    %592 = vmatprep.subr.mxu0 0.0
    %593 = vmatpush1.msra.mxu0 0.0
    %594 = vmatprep.subr.mxu0 0.0
    %595 = vmatpush1.msra.mxu0 0.0
    %596 = vmatprep.subr.mxu0 0.0
    %597 = vmatpush1.msra.mxu0 0.0
    %598 = vmatprep.subr.mxu0 0.0
    %599 = vmatpush1.msra.mxu0 0.0
    %600 = vmatprep.subr.mxu0 0.0
    %601 = vmatpush1.msra.mxu0 0.0
    %602 = vmatprep.subr.mxu0 0.0
    %603 = vmatpush1.msra.mxu0 0.0
    %604 = vmatprep.subr.mxu0 0.0
    %605 = vmatpush1.msra.mxu0 0.0
    %606 = vmatprep.subr.mxu0 0.0
    %607 = vmatpush1.msra.mxu0 0.0
    %608 = vmatprep.subr.mxu0 0.0
    %609 = vmatpush1.msra.mxu0 0.0
    %610 = vmatprep.subr.mxu0 0.0
    %611 = vmatpush1.msra.mxu0 0.0
    %612 = vmatprep.subr.mxu0 0.0
    %613 = vmatpush1.msra.mxu0 0.0
    %614 = vmatprep.subr.mxu0 0.0
    %615 = vmatpush1.msra.mxu0 0.0
    %616 = vmatprep.subr.mxu0 0.0
    %617 = vmatpush1.msra.mxu0 0.0
    %618 = vmatprep.subr.mxu0 0.0
    %619 = vmatpush1.msra.mxu0 %v490
    %620 = vmatprep.subr.mxu0 0.0
    %621 = vmatpush1.msra.mxu0 %v489
    %622 = vmatprep.subr.mxu0 0.0
    %623 = vmatpush2.msra.mxu0 0.0
    %624 = vmatprep.subr.mxu0 0.0
    %625 = vmatpush2.msra.mxu0 0.0
    %626 = vmatprep.subr.mxu0 0.0
    %627 = vmatpush2.msra.mxu0 0.0
    %628 = vmatprep.subr.mxu0 0.0
    %629 = vmatpush2.msra.mxu0 0.0
    %630 = vmatprep.subr.mxu0 0.0
    %631 = vmatpush2.msra.mxu0 0.0
    %632 = vmatprep.subr.mxu0 0.0
    %633 = vmatpush2.msra.mxu0 0.0
    %634 = vmatprep.subr.mxu0 0.0
    %635 = vmatpush2.msra.mxu0 0.0
    %636 = vmatprep.subr.mxu0 0.0
    %637 = vmatpush2.msra.mxu0 0.0
    %638 = vmatprep.subr.mxu0 0.0
    %639 = vmatpush2.msra.mxu0 0.0
    %640 = vmatprep.subr.mxu0 0.0
    %641 = vmatpush2.msra.mxu0 0.0
    %642 = vmatprep.subr.mxu0 0.0
    %643 = vmatpush2.msra.mxu0 0.0
    %644 = vmatprep.subr.mxu0 0.0
    %645 = vmatpush2.msra.mxu0 0.0
    %646 = vmatprep.subr.mxu0 0.0
    %647 = vmatpush2.msra.mxu0 0.0
    %648 = vmatprep.subr.mxu0 0.0
    %649 = vmatpush2.msra.mxu0 0.0
    %650 = vmatprep.subr.mxu0 0.0
    %651 = vmatpush2.msra.mxu0 0.0
    %652 = vmatprep.subr.mxu0 0.0
    %653 = vmatpush2.msra.mxu0 0.0
    %654 = vmatprep.mubr.f32.mxu0 0.0
    %655 = vmatmul.mubr.f32.gmra.mxu0 %v585
    %v656 = vpop.f32.mrf.mxu0
    %v657 = vadd.f32 %v576, %v656
    %v658 = vpop.f32.mrf.mxu0
    %659 = vmatprep.mubr.f32.mxu0 0.0
    %660 = vmatmul.mubr.f32.gmra.mxu0 %v588
    %v661 = vpop.f32.mrf.mxu0
    %v662 = vadd.f32 %v581, %v661
    %v663 = vpop.f32.mrf.mxu0
    %664 = vdwg.mxu0
    %665 = vrot.lane.b32.xlu0 %v489, 127
    %v666 = vpop.permute.xlu0 %665
    %667 = vrot.lane.b32.xlu0 %v490, 127
    %v668 = vpop.permute.xlu0 %667
    %v669 = vsel %vm345, %v666, 0.0
    %v670 = vsel %vm345, %v668, 0.0
    %s671 = scalar_lea.vmem %s4, 32
    %v672 = vld [vmem:[%s671] sm:$0xff]
    %v673 = vld [vmem:[%s671 + $0x8] sm:$0xff]
    %v675 = vsel %vm502, %v672, 0
    %v678 = vsel %vm502, %v673, 0
    %680 = vmatprep.subr.mxu0 0.0
    %681 = vmatpush1.msra.mxu0 0.0
    %682 = vmatprep.subr.mxu0 0.0
    %683 = vmatpush1.msra.mxu0 0.0
    %684 = vmatprep.subr.mxu0 0.0
    %685 = vmatpush1.msra.mxu0 0.0
    %686 = vmatprep.subr.mxu0 0.0
    %687 = vmatpush1.msra.mxu0 0.0
    %688 = vmatprep.subr.mxu0 0.0
    %689 = vmatpush1.msra.mxu0 0.0
    %690 = vmatprep.subr.mxu0 0.0
    %691 = vmatpush1.msra.mxu0 0.0
    %692 = vmatprep.subr.mxu0 0.0
    %693 = vmatpush1.msra.mxu0 0.0
    %694 = vmatprep.subr.mxu0 0.0
    %695 = vmatpush1.msra.mxu0 0.0
    %696 = vmatprep.subr.mxu0 0.0
    %697 = vmatpush1.msra.mxu0 0.0
    %698 = vmatprep.subr.mxu0 0.0
    %699 = vmatpush1.msra.mxu0 0.0
    %700 = vmatprep.subr.mxu0 0.0
    %701 = vmatpush1.msra.mxu0 0.0
    %702 = vmatprep.subr.mxu0 0.0
    %703 = vmatpush1.msra.mxu0 0.0
    %704 = vmatprep.subr.mxu0 0.0
    %705 = vmatpush1.msra.mxu0 0.0
    %706 = vmatprep.subr.mxu0 0.0
    %707 = vmatpush1.msra.mxu0 0.0
    %708 = vmatprep.subr.mxu0 0.0
    %709 = vmatpush1.msra.mxu0 %v670
    %710 = vmatprep.subr.mxu0 0.0
    %711 = vmatpush1.msra.mxu0 %v669
    %712 = vmatprep.subr.mxu0 0.0
    %713 = vmatpush2.msra.mxu0 0.0
    %714 = vmatprep.subr.mxu0 0.0
    %715 = vmatpush2.msra.mxu0 0.0
    %716 = vmatprep.subr.mxu0 0.0
    %717 = vmatpush2.msra.mxu0 0.0
    %718 = vmatprep.subr.mxu0 0.0
    %719 = vmatpush2.msra.mxu0 0.0
    %720 = vmatprep.subr.mxu0 0.0
    %721 = vmatpush2.msra.mxu0 0.0
    %722 = vmatprep.subr.mxu0 0.0
    %723 = vmatpush2.msra.mxu0 0.0
    %724 = vmatprep.subr.mxu0 0.0
    %725 = vmatpush2.msra.mxu0 0.0
    %726 = vmatprep.subr.mxu0 0.0
    %727 = vmatpush2.msra.mxu0 0.0
    %728 = vmatprep.subr.mxu0 0.0
    %729 = vmatpush2.msra.mxu0 0.0
    %730 = vmatprep.subr.mxu0 0.0
    %731 = vmatpush2.msra.mxu0 0.0
    %732 = vmatprep.subr.mxu0 0.0
    %733 = vmatpush2.msra.mxu0 0.0
    %734 = vmatprep.subr.mxu0 0.0
    %735 = vmatpush2.msra.mxu0 0.0
    %736 = vmatprep.subr.mxu0 0.0
    %737 = vmatpush2.msra.mxu0 0.0
    %738 = vmatprep.subr.mxu0 0.0
    %739 = vmatpush2.msra.mxu0 0.0
    %740 = vmatprep.subr.mxu0 0.0
    %741 = vmatpush2.msra.mxu0 0.0
    %742 = vmatprep.subr.mxu0 0.0
    %743 = vmatpush2.msra.mxu0 0.0
    %744 = vmatprep.mubr.f32.mxu0 0.0
    %745 = vmatmul.mubr.f32.gmra.mxu0 %v675
    %v746 = vpop.f32.mrf.mxu0
    %v747 = vadd.f32 0.0, %v746
    %v748 = vpop.f32.mrf.mxu0
    %749 = vmatprep.mubr.f32.mxu0 0.0
    %750 = vmatmul.mubr.f32.gmra.mxu0 %v678
    %v751 = vpop.f32.mrf.mxu0
    %v752 = vadd.f32 0.0, %v751
    %v753 = vpop.f32.mrf.mxu0
    %754 = vdwg.mxu0
    %v755 = vadd.f32 %v657, %v747
    %v756 = vadd.f32 %v662, %v752
    %757 = vadd.xlane.f32.xlu0 %v755
    %v758 = vpop.xlane.xlu0 %757
    %759 = vadd.xlane.f32.xlu0 %v756
    %v760 = vpop.xlane.xlu0 %759
    %v761 = vmul.f32 %v758, 0.0078125
    %v762 = vmul.f32 %v760, 0.0078125
    %v763 = vmul.f32 %v755, %v755
    %v764 = vmul.f32 %v756, %v756
    %765 = vadd.xlane.f32.xlu0 %v763
    %v766 = vpop.xlane.xlu0 %765
    %767 = vadd.xlane.f32.xlu0 %v764
    %v768 = vpop.xlane.xlu0 %767
    %v769 = vmul.f32 %v766, 0.0078125
    %v770 = vmul.f32 %v768, 0.0078125
    %v771 = vmul.f32 %v761, %v761
    %v772 = vmul.f32 %v762, %v762
    %v773 = vsub.f32 %v769, %v771
    %v774 = vsub.f32 %v770, %v772
    %v775 = vld [vmem:[%s5] sm:$0xff]
    %v776 = vld [vmem:[%s5 + $0x8] sm:$0xff]
    %v777 = vadd.f32 %v773, 1e-05
    %v778 = vadd.f32 %v774, 1e-05
    %v779 = vrsqrt.pop %v777
    %v780 = vrsqrt.pop %v778
    %v781 = vmul.f32 %v775, %v779
    %v782 = vmul.f32 %v776, %v780
    %v783 = vld [vmem:[%s6] sm:$0xff]
    %v784 = vld [vmem:[%s6 + $0x8] sm:$0xff]
    %v785 = vmul.f32 %v761, %v781
    %v786 = vmul.f32 %v762, %v782
    %v787 = vsub.f32 %v783, %v785
    %v788 = vsub.f32 %v784, %v786
    %790 = vset.pattern.permute.xlu0 0
    %791 = vperm.xlu0 %790, %v781
    %v792 = vpop.permute.xlu0 %791
    %795 = vset.pattern.permute.xlu0 0
    %796 = vperm.xlu0 %795, %v782
    %v797 = vpop.permute.xlu0 %796
    %v799 = vmul.f32 %v755, %v792
    %v800 = vmul.f32 %v756, %v797
    %802 = vset.pattern.permute.xlu0 0
    %803 = vperm.xlu0 %802, %v787
    %v804 = vpop.permute.xlu0 %803
    %807 = vset.pattern.permute.xlu0 0
    %808 = vperm.xlu0 %807, %v788
    %v809 = vpop.permute.xlu0 %808
    %v811 = vadd.f32 %v799, %v804
    %v812 = vadd.f32 %v800, %v809
    %v813 = vadd.f32 %v811, %v160
    %v814 = vadd.f32 %v812, %v165
    %v815 = vmax.f32 %v813, 0.0
    %v816 = vmax.f32 %v814, 0.0
    %s817 = scalar_lea.vmem %s9, 16
    %v818 = vld [vmem:[%s817] sm:$0xff]
    %v819 = vld [vmem:[%s817 + $0x8] sm:$0xff]
    %vm820 = vcmp.ge.s32.totalorder %v71, 2
    %821 = vrot.lane.b32.xlu0 %v815, 2
    %v822 = vpop.permute.xlu0 %821
    %823 = vrot.lane.b32.xlu0 %v816, 2
    %v824 = vpop.permute.xlu0 %823
    %v825 = vsel %vm820, 1, 0
    %vm826 = vcmp.eq.s32.totalorder %v825, 1
    %v827 = vsel %vm826, %v822, 0.0
    %v828 = vsel %vm826, %v824, 0.0
    %v829 = vld [vmem:[%s9] sm:$0xff]
    %v830 = vld [vmem:[%s9 + $0x8] sm:$0xff]
    %v832 = vsel %vm502, %v829, 0
    %v835 = vsel %vm502, %v830, 0
    %837 = vmatprep.subr.mxu0 0.0
    %838 = vmatpush1.msra.mxu0 0.0
    %839 = vmatprep.subr.mxu0 0.0
    %840 = vmatpush1.msra.mxu0 0.0
    %841 = vmatprep.subr.mxu0 0.0
    %842 = vmatpush1.msra.mxu0 0.0
    %843 = vmatprep.subr.mxu0 0.0
    %844 = vmatpush1.msra.mxu0 0.0
    %845 = vmatprep.subr.mxu0 0.0
    %846 = vmatpush1.msra.mxu0 0.0
    %847 = vmatprep.subr.mxu0 0.0
    %848 = vmatpush1.msra.mxu0 0.0
    %849 = vmatprep.subr.mxu0 0.0
    %850 = vmatpush1.msra.mxu0 0.0
    %851 = vmatprep.subr.mxu0 0.0
    %852 = vmatpush1.msra.mxu0 0.0
    %853 = vmatprep.subr.mxu0 0.0
    %854 = vmatpush1.msra.mxu0 0.0
    %855 = vmatprep.subr.mxu0 0.0
    %856 = vmatpush1.msra.mxu0 0.0
    %857 = vmatprep.subr.mxu0 0.0
    %858 = vmatpush1.msra.mxu0 0.0
    %859 = vmatprep.subr.mxu0 0.0
    %860 = vmatpush1.msra.mxu0 0.0
    %861 = vmatprep.subr.mxu0 0.0
    %862 = vmatpush1.msra.mxu0 0.0
    %863 = vmatprep.subr.mxu0 0.0
    %864 = vmatpush1.msra.mxu0 0.0
    %865 = vmatprep.subr.mxu0 0.0
    %866 = vmatpush1.msra.mxu0 %v828
    %867 = vmatprep.subr.mxu0 0.0
    %868 = vmatpush1.msra.mxu0 %v827
    %869 = vmatprep.subr.mxu0 0.0
    %870 = vmatpush2.msra.mxu0 0.0
    %871 = vmatprep.subr.mxu0 0.0
    %872 = vmatpush2.msra.mxu0 0.0
    %873 = vmatprep.subr.mxu0 0.0
    %874 = vmatpush2.msra.mxu0 0.0
    %875 = vmatprep.subr.mxu0 0.0
    %876 = vmatpush2.msra.mxu0 0.0
    %877 = vmatprep.subr.mxu0 0.0
    %878 = vmatpush2.msra.mxu0 0.0
    %879 = vmatprep.subr.mxu0 0.0
    %880 = vmatpush2.msra.mxu0 0.0
    %881 = vmatprep.subr.mxu0 0.0
    %882 = vmatpush2.msra.mxu0 0.0
    %883 = vmatprep.subr.mxu0 0.0
    %884 = vmatpush2.msra.mxu0 0.0
    %885 = vmatprep.subr.mxu0 0.0
    %886 = vmatpush2.msra.mxu0 0.0
    %887 = vmatprep.subr.mxu0 0.0
    %888 = vmatpush2.msra.mxu0 0.0
    %889 = vmatprep.subr.mxu0 0.0
    %890 = vmatpush2.msra.mxu0 0.0
    %891 = vmatprep.subr.mxu0 0.0
    %892 = vmatpush2.msra.mxu0 0.0
    %893 = vmatprep.subr.mxu0 0.0
    %894 = vmatpush2.msra.mxu0 0.0
    %895 = vmatprep.subr.mxu0 0.0
    %896 = vmatpush2.msra.mxu0 0.0
    %897 = vmatprep.subr.mxu0 0.0
    %898 = vmatpush2.msra.mxu0 0.0
    %899 = vmatprep.subr.mxu0 0.0
    %900 = vmatpush2.msra.mxu0 0.0
    %901 = vmatprep.mubr.f32.mxu0 0.0
    %902 = vmatmul.mubr.f32.gmra.mxu0 %v832
    %v903 = vpop.f32.mrf.mxu0
    %v904 = vadd.f32 0.0, %v903
    %v905 = vpop.f32.mrf.mxu0
    %906 = vmatprep.mubr.f32.mxu0 0.0
    %907 = vmatmul.mubr.f32.gmra.mxu0 %v835
    %v908 = vpop.f32.mrf.mxu0
    %v909 = vadd.f32 0.0, %v908
    %v910 = vpop.f32.mrf.mxu0
    %911 = vdwg.mxu0
    %v913 = vsel %vm502, %v818, 0
    %v916 = vsel %vm502, %v819, 0
    %918 = vmatprep.subr.mxu0 0.0
    %919 = vmatpush1.msra.mxu0 0.0
    %920 = vmatprep.subr.mxu0 0.0
    %921 = vmatpush1.msra.mxu0 0.0
    %922 = vmatprep.subr.mxu0 0.0
    %923 = vmatpush1.msra.mxu0 0.0
    %924 = vmatprep.subr.mxu0 0.0
    %925 = vmatpush1.msra.mxu0 0.0
    %926 = vmatprep.subr.mxu0 0.0
    %927 = vmatpush1.msra.mxu0 0.0
    %928 = vmatprep.subr.mxu0 0.0
    %929 = vmatpush1.msra.mxu0 0.0
    %930 = vmatprep.subr.mxu0 0.0
    %931 = vmatpush1.msra.mxu0 0.0
    %932 = vmatprep.subr.mxu0 0.0
    %933 = vmatpush1.msra.mxu0 0.0
    %934 = vmatprep.subr.mxu0 0.0
    %935 = vmatpush1.msra.mxu0 0.0
    %936 = vmatprep.subr.mxu0 0.0
    %937 = vmatpush1.msra.mxu0 0.0
    %938 = vmatprep.subr.mxu0 0.0
    %939 = vmatpush1.msra.mxu0 0.0
    %940 = vmatprep.subr.mxu0 0.0
    %941 = vmatpush1.msra.mxu0 0.0
    %942 = vmatprep.subr.mxu0 0.0
    %943 = vmatpush1.msra.mxu0 0.0
    %944 = vmatprep.subr.mxu0 0.0
    %945 = vmatpush1.msra.mxu0 0.0
    %946 = vmatprep.subr.mxu0 0.0
    %947 = vmatpush1.msra.mxu0 %v816
    %948 = vmatprep.subr.mxu0 0.0
    %949 = vmatpush1.msra.mxu0 %v815
    %950 = vmatprep.subr.mxu0 0.0
    %951 = vmatpush2.msra.mxu0 0.0
    %952 = vmatprep.subr.mxu0 0.0
    %953 = vmatpush2.msra.mxu0 0.0
    %954 = vmatprep.subr.mxu0 0.0
    %955 = vmatpush2.msra.mxu0 0.0
    %956 = vmatprep.subr.mxu0 0.0
    %957 = vmatpush2.msra.mxu0 0.0
    %958 = vmatprep.subr.mxu0 0.0
    %959 = vmatpush2.msra.mxu0 0.0
    %960 = vmatprep.subr.mxu0 0.0
    %961 = vmatpush2.msra.mxu0 0.0
    %962 = vmatprep.subr.mxu0 0.0
    %963 = vmatpush2.msra.mxu0 0.0
    %964 = vmatprep.subr.mxu0 0.0
    %965 = vmatpush2.msra.mxu0 0.0
    %966 = vmatprep.subr.mxu0 0.0
    %967 = vmatpush2.msra.mxu0 0.0
    %968 = vmatprep.subr.mxu0 0.0
    %969 = vmatpush2.msra.mxu0 0.0
    %970 = vmatprep.subr.mxu0 0.0
    %971 = vmatpush2.msra.mxu0 0.0
    %972 = vmatprep.subr.mxu0 0.0
    %973 = vmatpush2.msra.mxu0 0.0
    %974 = vmatprep.subr.mxu0 0.0
    %975 = vmatpush2.msra.mxu0 0.0
    %976 = vmatprep.subr.mxu0 0.0
    %977 = vmatpush2.msra.mxu0 0.0
    %978 = vmatprep.subr.mxu0 0.0
    %979 = vmatpush2.msra.mxu0 0.0
    %980 = vmatprep.subr.mxu0 0.0
    %981 = vmatpush2.msra.mxu0 0.0
    %982 = vmatprep.mubr.f32.mxu0 0.0
    %983 = vmatmul.mubr.f32.gmra.mxu0 %v913
    %v984 = vpop.f32.mrf.mxu0
    %v985 = vadd.f32 %v904, %v984
    %v986 = vpop.f32.mrf.mxu0
    %987 = vmatprep.mubr.f32.mxu0 0.0
    %988 = vmatmul.mubr.f32.gmra.mxu0 %v916
    %v989 = vpop.f32.mrf.mxu0
    %v990 = vadd.f32 %v909, %v989
    %v991 = vpop.f32.mrf.mxu0
    %992 = vdwg.mxu0
    %vm993 = vcmp.lt.s32.totalorder %v71, 62
    %994 = vrot.lane.b32.xlu0 %v815, 126
    %v995 = vpop.permute.xlu0 %994
    %996 = vrot.lane.b32.xlu0 %v816, 126
    %v997 = vpop.permute.xlu0 %996
    %v998 = vsel %vm993, 1, 0
    %vm999 = vcmp.eq.s32.totalorder %v998, 1
    %v1000 = vsel %vm999, %v995, 0.0
    %v1001 = vsel %vm999, %v997, 0.0
    %s1002 = scalar_lea.vmem %s9, 32
    %v1003 = vld [vmem:[%s1002] sm:$0xff]
    %v1004 = vld [vmem:[%s1002 + $0x8] sm:$0xff]
    %v1006 = vsel %vm502, %v1003, 0
    %v1009 = vsel %vm502, %v1004, 0
    %1011 = vmatprep.subr.mxu0 0.0
    %1012 = vmatpush1.msra.mxu0 0.0
    %1013 = vmatprep.subr.mxu0 0.0
    %1014 = vmatpush1.msra.mxu0 0.0
    %1015 = vmatprep.subr.mxu0 0.0
    %1016 = vmatpush1.msra.mxu0 0.0
    %1017 = vmatprep.subr.mxu0 0.0
    %1018 = vmatpush1.msra.mxu0 0.0
    %1019 = vmatprep.subr.mxu0 0.0
    %1020 = vmatpush1.msra.mxu0 0.0
    %1021 = vmatprep.subr.mxu0 0.0
    %1022 = vmatpush1.msra.mxu0 0.0
    %1023 = vmatprep.subr.mxu0 0.0
    %1024 = vmatpush1.msra.mxu0 0.0
    %1025 = vmatprep.subr.mxu0 0.0
    %1026 = vmatpush1.msra.mxu0 0.0
    %1027 = vmatprep.subr.mxu0 0.0
    %1028 = vmatpush1.msra.mxu0 0.0
    %1029 = vmatprep.subr.mxu0 0.0
    %1030 = vmatpush1.msra.mxu0 0.0
    %1031 = vmatprep.subr.mxu0 0.0
    %1032 = vmatpush1.msra.mxu0 0.0
    %1033 = vmatprep.subr.mxu0 0.0
    %1034 = vmatpush1.msra.mxu0 0.0
    %1035 = vmatprep.subr.mxu0 0.0
    %1036 = vmatpush1.msra.mxu0 0.0
    %1037 = vmatprep.subr.mxu0 0.0
    %1038 = vmatpush1.msra.mxu0 0.0
    %1039 = vmatprep.subr.mxu0 0.0
    %1040 = vmatpush1.msra.mxu0 %v1001
    %1041 = vmatprep.subr.mxu0 0.0
    %1042 = vmatpush1.msra.mxu0 %v1000
    %1043 = vmatprep.subr.mxu0 0.0
    %1044 = vmatpush2.msra.mxu0 0.0
    %1045 = vmatprep.subr.mxu0 0.0
    %1046 = vmatpush2.msra.mxu0 0.0
    %1047 = vmatprep.subr.mxu0 0.0
    %1048 = vmatpush2.msra.mxu0 0.0
    %1049 = vmatprep.subr.mxu0 0.0
    %1050 = vmatpush2.msra.mxu0 0.0
    %1051 = vmatprep.subr.mxu0 0.0
    %1052 = vmatpush2.msra.mxu0 0.0
    %1053 = vmatprep.subr.mxu0 0.0
    %1054 = vmatpush2.msra.mxu0 0.0
    %1055 = vmatprep.subr.mxu0 0.0
    %1056 = vmatpush2.msra.mxu0 0.0
    %1057 = vmatprep.subr.mxu0 0.0
    %1058 = vmatpush2.msra.mxu0 0.0
    %1059 = vmatprep.subr.mxu0 0.0
    %1060 = vmatpush2.msra.mxu0 0.0
    %1061 = vmatprep.subr.mxu0 0.0
    %1062 = vmatpush2.msra.mxu0 0.0
    %1063 = vmatprep.subr.mxu0 0.0
    %1064 = vmatpush2.msra.mxu0 0.0
    %1065 = vmatprep.subr.mxu0 0.0
    %1066 = vmatpush2.msra.mxu0 0.0
    %1067 = vmatprep.subr.mxu0 0.0
    %1068 = vmatpush2.msra.mxu0 0.0
    %1069 = vmatprep.subr.mxu0 0.0
    %1070 = vmatpush2.msra.mxu0 0.0
    %1071 = vmatprep.subr.mxu0 0.0
    %1072 = vmatpush2.msra.mxu0 0.0
    %1073 = vmatprep.subr.mxu0 0.0
    %1074 = vmatpush2.msra.mxu0 0.0
    %1075 = vmatprep.mubr.f32.mxu0 0.0
    %1076 = vmatmul.mubr.f32.gmra.mxu0 %v1006
    %v1077 = vpop.f32.mrf.mxu0
    %v1078 = vadd.f32 0.0, %v1077
    %v1079 = vpop.f32.mrf.mxu0
    %1080 = vmatprep.mubr.f32.mxu0 0.0
    %1081 = vmatmul.mubr.f32.gmra.mxu0 %v1009
    %v1082 = vpop.f32.mrf.mxu0
    %v1083 = vadd.f32 0.0, %v1082
    %v1084 = vpop.f32.mrf.mxu0
    %1085 = vdwg.mxu0
    %v1086 = vadd.f32 %v985, %v1078
    %v1087 = vadd.f32 %v990, %v1083
    %1088 = vadd.xlane.f32.xlu0 %v1086
    %v1089 = vpop.xlane.xlu0 %1088
    %1090 = vadd.xlane.f32.xlu0 %v1087
    %v1091 = vpop.xlane.xlu0 %1090
    %v1092 = vmul.f32 %v1089, 0.0078125
    %v1093 = vmul.f32 %v1091, 0.0078125
    %v1094 = vmul.f32 %v1086, %v1086
    %v1095 = vmul.f32 %v1087, %v1087
    %1096 = vadd.xlane.f32.xlu0 %v1094
    %v1097 = vpop.xlane.xlu0 %1096
    %1098 = vadd.xlane.f32.xlu0 %v1095
    %v1099 = vpop.xlane.xlu0 %1098
    %v1100 = vmul.f32 %v1097, 0.0078125
    %v1101 = vmul.f32 %v1099, 0.0078125
    %v1102 = vmul.f32 %v1092, %v1092
    %v1103 = vmul.f32 %v1093, %v1093
    %v1104 = vsub.f32 %v1100, %v1102
    %v1105 = vsub.f32 %v1101, %v1103
    %v1106 = vld [vmem:[%s10] sm:$0xff]
    %v1107 = vld [vmem:[%s10 + $0x8] sm:$0xff]
    %v1108 = vadd.f32 %v1104, 1e-05
    %v1109 = vadd.f32 %v1105, 1e-05
    %v1110 = vrsqrt.pop %v1108
    %v1111 = vrsqrt.pop %v1109
    %v1112 = vmul.f32 %v1106, %v1110
    %v1113 = vmul.f32 %v1107, %v1111
    %v1114 = vld [vmem:[%s11] sm:$0xff]
    %v1115 = vld [vmem:[%s11 + $0x8] sm:$0xff]
    %v1116 = vmul.f32 %v1092, %v1112
    %v1117 = vmul.f32 %v1093, %v1113
    %v1118 = vsub.f32 %v1114, %v1116
    %v1119 = vsub.f32 %v1115, %v1117
    %1121 = vset.pattern.permute.xlu0 0
    %1122 = vperm.xlu0 %1121, %v1112
    %v1123 = vpop.permute.xlu0 %1122
    %1126 = vset.pattern.permute.xlu0 0
    %1127 = vperm.xlu0 %1126, %v1113
    %v1128 = vpop.permute.xlu0 %1127
    %v1130 = vmul.f32 %v1086, %v1123
    %v1131 = vmul.f32 %v1087, %v1128
    %1133 = vset.pattern.permute.xlu0 0
    %1134 = vperm.xlu0 %1133, %v1118
    %v1135 = vpop.permute.xlu0 %1134
    %1138 = vset.pattern.permute.xlu0 0
    %1139 = vperm.xlu0 %1138, %v1119
    %v1140 = vpop.permute.xlu0 %1139
    %v1142 = vadd.f32 %v1130, %v1135
    %v1143 = vadd.f32 %v1131, %v1140
    %v1144 = vmax.f32 %v1142, 0.0
    %v1145 = vmax.f32 %v1143, 0.0
    %s1146 = scalar_lea.vmem %s12, 16
    %v1147 = vld [vmem:[%s1146] sm:$0xff]
    %v1148 = vld [vmem:[%s1146 + $0x8] sm:$0xff]
    %1149 = vrot.lane.b32.xlu0 %v1144, 2
    %v1150 = vpop.permute.xlu0 %1149
    %1151 = vrot.lane.b32.xlu0 %v1145, 2
    %v1152 = vpop.permute.xlu0 %1151
    %v1153 = vsel %vm826, %v1150, 0.0
    %v1154 = vsel %vm826, %v1152, 0.0
    %v1155 = vld [vmem:[%s12] sm:$0xff]
    %v1156 = vld [vmem:[%s12 + $0x8] sm:$0xff]
    %v1158 = vsel %vm502, %v1155, 0
    %v1161 = vsel %vm502, %v1156, 0
    %1163 = vmatprep.subr.mxu0 0.0
    %1164 = vmatpush1.msra.mxu0 0.0
    %1165 = vmatprep.subr.mxu0 0.0
    %1166 = vmatpush1.msra.mxu0 0.0
    %1167 = vmatprep.subr.mxu0 0.0
    %1168 = vmatpush1.msra.mxu0 0.0
    %1169 = vmatprep.subr.mxu0 0.0
    %1170 = vmatpush1.msra.mxu0 0.0
    %1171 = vmatprep.subr.mxu0 0.0
    %1172 = vmatpush1.msra.mxu0 0.0
    %1173 = vmatprep.subr.mxu0 0.0
    %1174 = vmatpush1.msra.mxu0 0.0
    %1175 = vmatprep.subr.mxu0 0.0
    %1176 = vmatpush1.msra.mxu0 0.0
    %1177 = vmatprep.subr.mxu0 0.0
    %1178 = vmatpush1.msra.mxu0 0.0
    %1179 = vmatprep.subr.mxu0 0.0
    %1180 = vmatpush1.msra.mxu0 0.0
    %1181 = vmatprep.subr.mxu0 0.0
    %1182 = vmatpush1.msra.mxu0 0.0
    %1183 = vmatprep.subr.mxu0 0.0
    %1184 = vmatpush1.msra.mxu0 0.0
    %1185 = vmatprep.subr.mxu0 0.0
    %1186 = vmatpush1.msra.mxu0 0.0
    %1187 = vmatprep.subr.mxu0 0.0
    %1188 = vmatpush1.msra.mxu0 0.0
    %1189 = vmatprep.subr.mxu0 0.0
    %1190 = vmatpush1.msra.mxu0 0.0
    %1191 = vmatprep.subr.mxu0 0.0
    %1192 = vmatpush1.msra.mxu0 %v1154
    %1193 = vmatprep.subr.mxu0 0.0
    %1194 = vmatpush1.msra.mxu0 %v1153
    %1195 = vmatprep.subr.mxu0 0.0
    %1196 = vmatpush2.msra.mxu0 0.0
    %1197 = vmatprep.subr.mxu0 0.0
    %1198 = vmatpush2.msra.mxu0 0.0
    %1199 = vmatprep.subr.mxu0 0.0
    %1200 = vmatpush2.msra.mxu0 0.0
    %1201 = vmatprep.subr.mxu0 0.0
    %1202 = vmatpush2.msra.mxu0 0.0
    %1203 = vmatprep.subr.mxu0 0.0
    %1204 = vmatpush2.msra.mxu0 0.0
    %1205 = vmatprep.subr.mxu0 0.0
    %1206 = vmatpush2.msra.mxu0 0.0
    %1207 = vmatprep.subr.mxu0 0.0
    %1208 = vmatpush2.msra.mxu0 0.0
    %1209 = vmatprep.subr.mxu0 0.0
    %1210 = vmatpush2.msra.mxu0 0.0
    %1211 = vmatprep.subr.mxu0 0.0
    %1212 = vmatpush2.msra.mxu0 0.0
    %1213 = vmatprep.subr.mxu0 0.0
    %1214 = vmatpush2.msra.mxu0 0.0
    %1215 = vmatprep.subr.mxu0 0.0
    %1216 = vmatpush2.msra.mxu0 0.0
    %1217 = vmatprep.subr.mxu0 0.0
    %1218 = vmatpush2.msra.mxu0 0.0
    %1219 = vmatprep.subr.mxu0 0.0
    %1220 = vmatpush2.msra.mxu0 0.0
    %1221 = vmatprep.subr.mxu0 0.0
    %1222 = vmatpush2.msra.mxu0 0.0
    %1223 = vmatprep.subr.mxu0 0.0
    %1224 = vmatpush2.msra.mxu0 0.0
    %1225 = vmatprep.subr.mxu0 0.0
    %1226 = vmatpush2.msra.mxu0 0.0
    %1227 = vmatprep.mubr.f32.mxu0 0.0
    %1228 = vmatmul.mubr.f32.gmra.mxu0 %v1158
    %v1229 = vpop.f32.mrf.mxu0
    %v1230 = vadd.f32 0.0, %v1229
    %v1231 = vpop.f32.mrf.mxu0
    %1232 = vmatprep.mubr.f32.mxu0 0.0
    %1233 = vmatmul.mubr.f32.gmra.mxu0 %v1161
    %v1234 = vpop.f32.mrf.mxu0
    %v1235 = vadd.f32 0.0, %v1234
    %v1236 = vpop.f32.mrf.mxu0
    %1237 = vdwg.mxu0
    %v1239 = vsel %vm502, %v1147, 0
    %v1242 = vsel %vm502, %v1148, 0
    %1244 = vmatprep.subr.mxu0 0.0
    %1245 = vmatpush1.msra.mxu0 0.0
    %1246 = vmatprep.subr.mxu0 0.0
    %1247 = vmatpush1.msra.mxu0 0.0
    %1248 = vmatprep.subr.mxu0 0.0
    %1249 = vmatpush1.msra.mxu0 0.0
    %1250 = vmatprep.subr.mxu0 0.0
    %1251 = vmatpush1.msra.mxu0 0.0
    %1252 = vmatprep.subr.mxu0 0.0
    %1253 = vmatpush1.msra.mxu0 0.0
    %1254 = vmatprep.subr.mxu0 0.0
    %1255 = vmatpush1.msra.mxu0 0.0
    %1256 = vmatprep.subr.mxu0 0.0
    %1257 = vmatpush1.msra.mxu0 0.0
    %1258 = vmatprep.subr.mxu0 0.0
    %1259 = vmatpush1.msra.mxu0 0.0
    %1260 = vmatprep.subr.mxu0 0.0
    %1261 = vmatpush1.msra.mxu0 0.0
    %1262 = vmatprep.subr.mxu0 0.0
    %1263 = vmatpush1.msra.mxu0 0.0
    %1264 = vmatprep.subr.mxu0 0.0
    %1265 = vmatpush1.msra.mxu0 0.0
    %1266 = vmatprep.subr.mxu0 0.0
    %1267 = vmatpush1.msra.mxu0 0.0
    %1268 = vmatprep.subr.mxu0 0.0
    %1269 = vmatpush1.msra.mxu0 0.0
    %1270 = vmatprep.subr.mxu0 0.0
    %1271 = vmatpush1.msra.mxu0 0.0
    %1272 = vmatprep.subr.mxu0 0.0
    %1273 = vmatpush1.msra.mxu0 %v1145
    %1274 = vmatprep.subr.mxu0 0.0
    %1275 = vmatpush1.msra.mxu0 %v1144
    %1276 = vmatprep.subr.mxu0 0.0
    %1277 = vmatpush2.msra.mxu0 0.0
    %1278 = vmatprep.subr.mxu0 0.0
    %1279 = vmatpush2.msra.mxu0 0.0
    %1280 = vmatprep.subr.mxu0 0.0
    %1281 = vmatpush2.msra.mxu0 0.0
    %1282 = vmatprep.subr.mxu0 0.0
    %1283 = vmatpush2.msra.mxu0 0.0
    %1284 = vmatprep.subr.mxu0 0.0
    %1285 = vmatpush2.msra.mxu0 0.0
    %1286 = vmatprep.subr.mxu0 0.0
    %1287 = vmatpush2.msra.mxu0 0.0
    %1288 = vmatprep.subr.mxu0 0.0
    %1289 = vmatpush2.msra.mxu0 0.0
    %1290 = vmatprep.subr.mxu0 0.0
    %1291 = vmatpush2.msra.mxu0 0.0
    %1292 = vmatprep.subr.mxu0 0.0
    %1293 = vmatpush2.msra.mxu0 0.0
    %1294 = vmatprep.subr.mxu0 0.0
    %1295 = vmatpush2.msra.mxu0 0.0
    %1296 = vmatprep.subr.mxu0 0.0
    %1297 = vmatpush2.msra.mxu0 0.0
    %1298 = vmatprep.subr.mxu0 0.0
    %1299 = vmatpush2.msra.mxu0 0.0
    %1300 = vmatprep.subr.mxu0 0.0
    %1301 = vmatpush2.msra.mxu0 0.0
    %1302 = vmatprep.subr.mxu0 0.0
    %1303 = vmatpush2.msra.mxu0 0.0
    %1304 = vmatprep.subr.mxu0 0.0
    %1305 = vmatpush2.msra.mxu0 0.0
    %1306 = vmatprep.subr.mxu0 0.0
    %1307 = vmatpush2.msra.mxu0 0.0
    %1308 = vmatprep.mubr.f32.mxu0 0.0
    %1309 = vmatmul.mubr.f32.gmra.mxu0 %v1239
    %v1310 = vpop.f32.mrf.mxu0
    %v1311 = vadd.f32 %v1230, %v1310
    %v1312 = vpop.f32.mrf.mxu0
    %1313 = vmatprep.mubr.f32.mxu0 0.0
    %1314 = vmatmul.mubr.f32.gmra.mxu0 %v1242
    %v1315 = vpop.f32.mrf.mxu0
    %v1316 = vadd.f32 %v1235, %v1315
    %v1317 = vpop.f32.mrf.mxu0
    %1318 = vdwg.mxu0
    %1319 = vrot.lane.b32.xlu0 %v1144, 126
    %v1320 = vpop.permute.xlu0 %1319
    %1321 = vrot.lane.b32.xlu0 %v1145, 126
    %v1322 = vpop.permute.xlu0 %1321
    %v1323 = vsel %vm999, %v1320, 0.0
    %v1324 = vsel %vm999, %v1322, 0.0
    %s1325 = scalar_lea.vmem %s12, 32
    %v1326 = vld [vmem:[%s1325] sm:$0xff]
    %v1327 = vld [vmem:[%s1325 + $0x8] sm:$0xff]
    %v1329 = vsel %vm502, %v1326, 0
    %v1332 = vsel %vm502, %v1327, 0
    %1334 = vmatprep.subr.mxu0 0.0
    %1335 = vmatpush1.msra.mxu0 0.0
    %1336 = vmatprep.subr.mxu0 0.0
    %1337 = vmatpush1.msra.mxu0 0.0
    %1338 = vmatprep.subr.mxu0 0.0
    %1339 = vmatpush1.msra.mxu0 0.0
    %1340 = vmatprep.subr.mxu0 0.0
    %1341 = vmatpush1.msra.mxu0 0.0
    %1342 = vmatprep.subr.mxu0 0.0
    %1343 = vmatpush1.msra.mxu0 0.0
    %1344 = vmatprep.subr.mxu0 0.0
    %1345 = vmatpush1.msra.mxu0 0.0
    %1346 = vmatprep.subr.mxu0 0.0
    %1347 = vmatpush1.msra.mxu0 0.0
    %1348 = vmatprep.subr.mxu0 0.0
    %1349 = vmatpush1.msra.mxu0 0.0
    %1350 = vmatprep.subr.mxu0 0.0
    %1351 = vmatpush1.msra.mxu0 0.0
    %1352 = vmatprep.subr.mxu0 0.0
    %1353 = vmatpush1.msra.mxu0 0.0
    %1354 = vmatprep.subr.mxu0 0.0
    %1355 = vmatpush1.msra.mxu0 0.0
    %1356 = vmatprep.subr.mxu0 0.0
    %1357 = vmatpush1.msra.mxu0 0.0
    %1358 = vmatprep.subr.mxu0 0.0
    %1359 = vmatpush1.msra.mxu0 0.0
    %1360 = vmatprep.subr.mxu0 0.0
    %1361 = vmatpush1.msra.mxu0 0.0
    %1362 = vmatprep.subr.mxu0 0.0
    %1363 = vmatpush1.msra.mxu0 %v1324
    %1364 = vmatprep.subr.mxu0 0.0
    %1365 = vmatpush1.msra.mxu0 %v1323
    %1366 = vmatprep.subr.mxu0 0.0
    %1367 = vmatpush2.msra.mxu0 0.0
    %1368 = vmatprep.subr.mxu0 0.0
    %1369 = vmatpush2.msra.mxu0 0.0
    %1370 = vmatprep.subr.mxu0 0.0
    %1371 = vmatpush2.msra.mxu0 0.0
    %1372 = vmatprep.subr.mxu0 0.0
    %1373 = vmatpush2.msra.mxu0 0.0
    %1374 = vmatprep.subr.mxu0 0.0
    %1375 = vmatpush2.msra.mxu0 0.0
    %1376 = vmatprep.subr.mxu0 0.0
    %1377 = vmatpush2.msra.mxu0 0.0
    %1378 = vmatprep.subr.mxu0 0.0
    %1379 = vmatpush2.msra.mxu0 0.0
    %1380 = vmatprep.subr.mxu0 0.0
    %1381 = vmatpush2.msra.mxu0 0.0
    %1382 = vmatprep.subr.mxu0 0.0
    %1383 = vmatpush2.msra.mxu0 0.0
    %1384 = vmatprep.subr.mxu0 0.0
    %1385 = vmatpush2.msra.mxu0 0.0
    %1386 = vmatprep.subr.mxu0 0.0
    %1387 = vmatpush2.msra.mxu0 0.0
    %1388 = vmatprep.subr.mxu0 0.0
    %1389 = vmatpush2.msra.mxu0 0.0
    %1390 = vmatprep.subr.mxu0 0.0
    %1391 = vmatpush2.msra.mxu0 0.0
    %1392 = vmatprep.subr.mxu0 0.0
    %1393 = vmatpush2.msra.mxu0 0.0
    %1394 = vmatprep.subr.mxu0 0.0
    %1395 = vmatpush2.msra.mxu0 0.0
    %1396 = vmatprep.subr.mxu0 0.0
    %1397 = vmatpush2.msra.mxu0 0.0
    %1398 = vmatprep.mubr.f32.mxu0 0.0
    %1399 = vmatmul.mubr.f32.gmra.mxu0 %v1329
    %v1400 = vpop.f32.mrf.mxu0
    %v1401 = vadd.f32 0.0, %v1400
    %v1402 = vpop.f32.mrf.mxu0
    %1403 = vmatprep.mubr.f32.mxu0 0.0
    %1404 = vmatmul.mubr.f32.gmra.mxu0 %v1332
    %v1405 = vpop.f32.mrf.mxu0
    %v1406 = vadd.f32 0.0, %v1405
    %v1407 = vpop.f32.mrf.mxu0
    %1408 = vdwg.mxu0
    %v1409 = vadd.f32 %v1311, %v1401
    %v1410 = vadd.f32 %v1316, %v1406
    %1411 = vadd.xlane.f32.xlu0 %v1409
    %v1412 = vpop.xlane.xlu0 %1411
    %1413 = vadd.xlane.f32.xlu0 %v1410
    %v1414 = vpop.xlane.xlu0 %1413
    %v1415 = vmul.f32 %v1412, 0.0078125
    %v1416 = vmul.f32 %v1414, 0.0078125
    %v1417 = vmul.f32 %v1409, %v1409
    %v1418 = vmul.f32 %v1410, %v1410
    %1419 = vadd.xlane.f32.xlu0 %v1417
    %v1420 = vpop.xlane.xlu0 %1419
    %1421 = vadd.xlane.f32.xlu0 %v1418
    %v1422 = vpop.xlane.xlu0 %1421
    %v1423 = vmul.f32 %v1420, 0.0078125
    %v1424 = vmul.f32 %v1422, 0.0078125
    %v1425 = vmul.f32 %v1415, %v1415
    %v1426 = vmul.f32 %v1416, %v1416
    %v1427 = vsub.f32 %v1423, %v1425
    %v1428 = vsub.f32 %v1424, %v1426
    %v1429 = vld [vmem:[%s13] sm:$0xff]
    %v1430 = vld [vmem:[%s13 + $0x8] sm:$0xff]
    %v1431 = vadd.f32 %v1427, 1e-05
    %v1432 = vadd.f32 %v1428, 1e-05
    %v1433 = vrsqrt.pop %v1431
    %v1434 = vrsqrt.pop %v1432
    %v1435 = vmul.f32 %v1429, %v1433
    %v1436 = vmul.f32 %v1430, %v1434
    %v1437 = vld [vmem:[%s14] sm:$0xff]
    %v1438 = vld [vmem:[%s14 + $0x8] sm:$0xff]
    %v1439 = vmul.f32 %v1415, %v1435
    %v1440 = vmul.f32 %v1416, %v1436
    %v1441 = vsub.f32 %v1437, %v1439
    %v1442 = vsub.f32 %v1438, %v1440
    %1444 = vset.pattern.permute.xlu0 0
    %1445 = vperm.xlu0 %1444, %v1435
    %v1446 = vpop.permute.xlu0 %1445
    %1449 = vset.pattern.permute.xlu0 0
    %1450 = vperm.xlu0 %1449, %v1436
    %v1451 = vpop.permute.xlu0 %1450
    %v1453 = vmul.f32 %v1409, %v1446
    %v1454 = vmul.f32 %v1410, %v1451
    %1456 = vset.pattern.permute.xlu0 0
    %1457 = vperm.xlu0 %1456, %v1441
    %v1458 = vpop.permute.xlu0 %1457
    %1461 = vset.pattern.permute.xlu0 0
    %1462 = vperm.xlu0 %1461, %v1442
    %v1463 = vpop.permute.xlu0 %1462
    %v1465 = vadd.f32 %v1453, %v1458
    %v1466 = vadd.f32 %v1454, %v1463
    %v1467 = vadd.f32 %v1465, %v815
    %v1468 = vadd.f32 %v1466, %v816
    %v1469 = vmax.f32 %v1467, 0.0
    %v1470 = vmax.f32 %v1468, 0.0
    %v1471 = vld [vmem:[%s15] sm:$0xff]
    %v1472 = vld [vmem:[%s16] sm:$0xff]
    %1474 = vset.pattern.permute.xlu0 0
    %1475 = vperm.xlu0 %1474, %v1472
    %v1476 = vpop.permute.xlu0 %1475
    %v1479 = vsel %vm502, %v1471, 0
    %1481 = vmatprep.subr.mxu0 0.0
    %1482 = vmatpush1.msra.mxu0 0.0
    %1483 = vmatprep.subr.mxu0 0.0
    %1484 = vmatpush1.msra.mxu0 0.0
    %1485 = vmatprep.subr.mxu0 0.0
    %1486 = vmatpush1.msra.mxu0 0.0
    %1487 = vmatprep.subr.mxu0 0.0
    %1488 = vmatpush1.msra.mxu0 0.0
    %1489 = vmatprep.subr.mxu0 0.0
    %1490 = vmatpush1.msra.mxu0 0.0
    %1491 = vmatprep.subr.mxu0 0.0
    %1492 = vmatpush1.msra.mxu0 0.0
    %1493 = vmatprep.subr.mxu0 0.0
    %1494 = vmatpush1.msra.mxu0 0.0
    %1495 = vmatprep.subr.mxu0 0.0
    %1496 = vmatpush1.msra.mxu0 0.0
    %1497 = vmatprep.subr.mxu0 0.0
    %1498 = vmatpush1.msra.mxu0 0.0
    %1499 = vmatprep.subr.mxu0 0.0
    %1500 = vmatpush1.msra.mxu0 0.0
    %1501 = vmatprep.subr.mxu0 0.0
    %1502 = vmatpush1.msra.mxu0 0.0
    %1503 = vmatprep.subr.mxu0 0.0
    %1504 = vmatpush1.msra.mxu0 0.0
    %1505 = vmatprep.subr.mxu0 0.0
    %1506 = vmatpush1.msra.mxu0 0.0
    %1507 = vmatprep.subr.mxu0 0.0
    %1508 = vmatpush1.msra.mxu0 0.0
    %1509 = vmatprep.subr.mxu0 0.0
    %1510 = vmatpush1.msra.mxu0 %v1470
    %1511 = vmatprep.subr.mxu0 0.0
    %1512 = vmatpush1.msra.mxu0 %v1469
    %1513 = vmatprep.subr.mxu0 0.0
    %1514 = vmatpush2.msra.mxu0 0.0
    %1515 = vmatprep.subr.mxu0 0.0
    %1516 = vmatpush2.msra.mxu0 0.0
    %1517 = vmatprep.subr.mxu0 0.0
    %1518 = vmatpush2.msra.mxu0 0.0
    %1519 = vmatprep.subr.mxu0 0.0
    %1520 = vmatpush2.msra.mxu0 0.0
    %1521 = vmatprep.subr.mxu0 0.0
    %1522 = vmatpush2.msra.mxu0 0.0
    %1523 = vmatprep.subr.mxu0 0.0
    %1524 = vmatpush2.msra.mxu0 0.0
    %1525 = vmatprep.subr.mxu0 0.0
    %1526 = vmatpush2.msra.mxu0 0.0
    %1527 = vmatprep.subr.mxu0 0.0
    %1528 = vmatpush2.msra.mxu0 0.0
    %1529 = vmatprep.subr.mxu0 0.0
    %1530 = vmatpush2.msra.mxu0 0.0
    %1531 = vmatprep.subr.mxu0 0.0
    %1532 = vmatpush2.msra.mxu0 0.0
    %1533 = vmatprep.subr.mxu0 0.0
    %1534 = vmatpush2.msra.mxu0 0.0
    %1535 = vmatprep.subr.mxu0 0.0
    %1536 = vmatpush2.msra.mxu0 0.0
    %1537 = vmatprep.subr.mxu0 0.0
    %1538 = vmatpush2.msra.mxu0 0.0
    %1539 = vmatprep.subr.mxu0 0.0
    %1540 = vmatpush2.msra.mxu0 0.0
    %1541 = vmatprep.subr.mxu0 0.0
    %1542 = vmatpush2.msra.mxu0 0.0
    %1543 = vmatprep.subr.mxu0 0.0
    %1544 = vmatpush2.msra.mxu0 0.0
    %1545 = vmatprep.mubr.f32.mxu0 0.0
    %1546 = vmatmul.mubr.f32.gmra.mxu0 %v1479
    %v1547 = vpop.f32.mrf.mxu0
    %v1548 = vadd.f32 %v1476, %v1547
    %v1549 = vpop.f32.mrf.mxu0
    %1550 = vdwg.mxu0
    %1551 = vst [vmem:[#allocation2] sm:$0xff] %v1548
    // Predicated region
    $region70: #{tpu_custom_call.1} parent=1 // pred_check
      _
    $region71: #{tpu_custom_call.1} parent=1 // pred_check_branch
      %1553 = sbr.rel (0) target = $region73
    $region72: #{tpu_custom_call.1} parent=1 // pred_region
      %s1555 = ssub.s32 128, 128
      %1556 = vsyncadd [#allocation3], %s1555
      %s1558 = sshll.u32 [#allocation2], 4
      %s1559 = int_to_ptr.vmem [resolvable:$true] %s1558
      %1561 = dma.vmem_to_hbm [thread:$0]  %s1559, 128, %s17, [#allocation3]
    $region73: #{tpu_custom_call.1} parent=1 // pred_fallthru
      _
    // Predicated region
    $region74: #{tpu_custom_call.1} parent=1 // pred_check
      _
    $region75: #{tpu_custom_call.1} parent=1 // pred_check_branch
      %1563 = sbr.rel (0) target = $region77
    $region76: #{tpu_custom_call.1} parent=1 // pred_region
      %1564 = dma.done [#allocation3], 128
    $region77: #{tpu_custom_call.1} parent=1 // pred_fallthru
      _
    %1565 = vsyncpa [#allocation3], 1

</llo_original>
